<compile_context>
chip_gen: v7x
topology: tpu7x:2x2x1
jax: 0.10.0
libtpu: 0.0.40
codegen_flags: <defaults>
</compile_context>

<pallas_src>
import functools

import jax
import jax.numpy as jnp
from jax.experimental import pallas as pl
from jax.experimental.pallas import tpu as pltpu

EPS = 1e-5   # PyTorch BatchNorm2d default eps


# ------------------------------ small helpers ------------------------------- #

def _round_up(x, m):
    return (x + m - 1) // m * m


def _tpu_vmem_capacity_bytes():
    try:
        info = pltpu.get_tpu_info()
        cap = getattr(info, "vmem_capacity_bytes", None)
        if cap:
            return int(cap)
    except Exception:
        pass
    return 64 * 1024 * 1024           # conservative default (v7x-sized)


def _vmem_limit_bytes():
    cap = _tpu_vmem_capacity_bytes()
    # headroom for Mosaic internal scratch + double-buffered blocks:
    # ~40 MiB on a 64 MiB part (v7x), up to 100 MiB on 128 MiB parts (v5e/v6e).
    return int(min(max(cap - 24 * 1024 * 1024, 32 * 1024 * 1024), 100 * 1024 * 1024))


def _is_v5e():
    try:
        kind = jax.devices()[0].device_kind.lower()
        return ("v5 lite" in kind) or ("v5e" in kind) or ("v5lite" in kind)
    except Exception:
        return False


# ------------------------------ Pallas kernels ------------------------------ #

def _make_conv_kernel(*, H, W, Cin, KH, KW, stride, dilation, padding,
                      TH, Wo, has_bias, use_bn, use_relu, im2col):
    """Conv (+bias) for one (batch, row-tile, Cout-tile) block.

    bn=False : writes the final (ReLU'ed) tile channel-major (NCHW), f32.
    bn=True  : writes a bf16 channel-last intermediate + per-tile BN partial stats.
    """
    s, d, p = stride, dilation, padding
    n_tile = TH * Wo

    def _rows(start):                       # dynamic row start (depends on row tile)
        return pl.ds(start, TH) if s == 1 else pl.ds(start, TH, s)

    def _cols(start):                       # static column start
        return slice(start, start + Wo) if s == 1 else pl.ds(start, Wo, s)

    def kernel(*refs):
        it = iter(refs)
        x_ref = next(it)                          # (1, H, W, Cin)           bf16
        w_ref = next(it)                          # (KH*KW*Cin, TCp)         bf16
        b_ref = next(it) if has_bias else None    # (1, TCp)                 f32
        o_ref = next(it)                          # bn: (1, n_tile, TCp) bf16 | (1, TCp, n_tile) f32
        st_ref = next(it) if use_bn else None     # (1, 1, 2, TCp)           f32
        xp_ref = next(it)                         # scratch (Hp, Wp, Cin)    bf16
        buf_ref = next(it)                        # im2col slab bf16 | f32 tap accumulator

        row0 = pl.multiple_of(pl.program_id(1) * (TH * s), TH * s)

        # ---- per-(batch, row-tile) work hoisted out of the Cout-tile axis ----
        @pl.when(pl.program_id(2) == 0)
        def _build():
            if p > 0:
                xp_ref[...] = jnp.zeros(xp_ref.shape, xp_ref.dtype)
            xp_ref[p:p + H, p:p + W, :] = x_ref[0]
            if im2col:
                # fold the KHxKW window into the contraction dim (in-VMEM im2col)
                for dy in range(KH):
                    for dx in range(KW):
                        t = dy * KW + dx
                        tap = xp_ref[_rows(row0 + dy * d), _cols(dx * d), :]
                        buf_ref[:, t * Cin:(t + 1) * Cin] = tap.reshape(n_tile, Cin)

        if im2col:
            # one bf16 x bf16 -> f32 MXU matmul per Cout tile
            y = jnp.dot(buf_ref[...], w_ref[...], preferred_element_type=jnp.float32)
        else:
            # Cin >= 128: accumulate KH*KW full-width matmuls, no input duplication
            for dy in range(KH):
                for dx in range(KW):
                    t = dy * KW + dx
                    tap = xp_ref[_rows(row0 + dy * d), _cols(dx * d), :]
                    part = jnp.dot(tap.reshape(n_tile, Cin),
                                   w_ref[t * Cin:(t + 1) * Cin, :],
                                   preferred_element_type=jnp.float32)
                    if t == 0:
                        buf_ref[...] = part
                    else:
                        buf_ref[...] += part
            y = buf_ref[...]

        if has_bias:
            y = y + b_ref[...]                       # (1, TCp) broadcast

        if use_bn:
            # per-tile (sum, centered M2) partial stats; exact combine in wrapper
            ssum = jnp.sum(y, axis=0, keepdims=True)
            mu = ssum * (1.0 / n_tile)
            st_ref[0, 0, 0:1, :] = ssum
            st_ref[0, 0, 1:2, :] = jnp.sum(jnp.square(y - mu), axis=0, keepdims=True)
            o_ref[0] = y.astype(o_ref.dtype)                       # bf16 intermediate (NHWC)
        else:
            if use_relu:
                y = jnp.maximum(y, 0.0)
            o_ref[0] = jnp.transpose(y).astype(o_ref.dtype)        # channel-major final (NCHW)

    return kernel


def _scale_shift_kernel(use_relu, y_ref, sc_ref, sh_ref, o_ref):
    """Pre-folded BN scale/shift (+ReLU) + in-kernel transpose to channel-major."""
    y = y_ref[0].astype(jnp.float32) * sc_ref[...] + sh_ref[...]
    if use_relu:
        y = jnp.maximum(y, 0.0)
    o_ref[0] = jnp.transpose(y).astype(o_ref.dtype)


# ------------------------------- JAX wrapper -------------------------------- #

def basic_conv_forward(x_nchw, w_oihw, bias, gamma, beta, *,
                       kernel_size, stride=1, padding=0, dilation=1,
                       groups=1, relu=True, bn=False):
    """BasicConv.forward: Conv2d(bias optional) -> optional BatchNorm2d -> optional ReLU."""
    if groups != 1:
        # TODO(synk): grouped convolution not implemented in the Pallas kernel.
        raise NotImplementedError("groups != 1 not supported")

    B, Cin, H, W = x_nchw.shape
    Cout = w_oihw.shape[0]
    KH = KW = int(kernel_size)
    Ho = (H + 2 * padding - dilation * (KH - 1) - 1) // stride + 1
    Wo = (W + 2 * padding - dilation * (KW - 1) - 1) // stride + 1
    Hp, Wp = H + 2 * padding, W + 2 * padding

    # ---- lane-dense Cout: pad up to a multiple of 128, slice at the end ----
    Cp = _round_up(Cout, 128)
    TCp = 128 if (_is_v5e() or Cp % 256 != 0) else 256   # 128-wide N tiles on v5e
    TCp = min(TCp, Cp)
    n_ct = Cp // TCp

    im2col = Cin < 128
    vlimit = _vmem_limit_bytes()

    def _est_vmem(TH):
        n_tile = TH * Wo
        total = 2 * H * W * Cin * 2                      # x blocks (bf16, x2 buffers)
        total += 2 * KH * KW * Cin * TCp * 2             # w blocks
        total += 2 * n_tile * TCp * (2 if bn else 4)     # out blocks
        total += Hp * Wp * Cin * 2                       # padded-input scratch
        total += n_tile * (KH * KW * Cin * 2 if im2col else TCp * 4)   # slab / accumulator
        total += n_tile * TCp * 4                        # live f32 result tile / transpose
        return total

    # ---- output-row tiling: bound VMEM and give the pipeline >= 8 steps ----
    cands = [t for t in range(Ho, 0, -1)
             if Ho % t == 0 and (t == Ho or (t * Wo) % 128 == 0)]
    fits = [t for t in cands if _est_vmem(t) <= int(0.6 * vlimit)]
    if fits:
        TH = fits[-1]
        for t in fits:                                   # largest tile reaching the step target
            if B * n_ct * (Ho // t) >= 8:
                TH = t
                break
    else:
        # TODO(synk): halo DMA / finer spatial tiling for feature maps this large.
        TH = cands[-1]
    n_rt = Ho // TH
    n_tile = TH * Wo

    # ---- layout glue (tiny): NCHW -> NHWC bf16, OIHW -> (KH*KW*Cin, Cp) bf16 ----
    x_nhwc = jnp.transpose(x_nchw, (0, 2, 3, 1)).astype(jnp.bfloat16)
    w2d = jnp.transpose(w_oihw, (2, 3, 1, 0)).reshape(KH * KW * Cin, Cout)
    if Cp != Cout:
        w2d = jnp.pad(w2d, ((0, 0), (0, Cp - Cout)))
    w2d = w2d.astype(jnp.bfloat16)

    # bias is mathematically cancelled by train-mode BN mean subtraction -> drop it
    has_bias = (bias is not None) and (not bn)

    kernel = _make_conv_kernel(H=H, W=W, Cin=Cin, KH=KH, KW=KW, stride=stride,
                               dilation=dilation, padding=padding, TH=TH, Wo=Wo,
                               has_bias=has_bias, use_bn=bn, use_relu=relu,
                               im2col=im2col)

    in_specs = [
        pl.BlockSpec((1, H, W, Cin), lambda b, r, j: (b, 0, 0, 0)),
        pl.BlockSpec((KH * KW * Cin, TCp), lambda b, r, j: (0, j)),
    ]
    args = [x_nhwc, w2d]
    if has_bias:
        bpad = bias if Cp == Cout else jnp.pad(bias, (0, Cp - Cout))
        in_specs.append(pl.BlockSpec((1, TCp), lambda b, r, j: (0, j)))
        args.append(bpad.reshape(1, Cp).astype(jnp.float32))

    scratch = [pltpu.VMEM((Hp, Wp, Cin), jnp.bfloat16)]           # padded input tile
    if im2col:
        scratch.append(pltpu.VMEM((n_tile, KH * KW * Cin), jnp.bfloat16))   # im2col slab
    else:
        scratch.append(pltpu.VMEM((n_tile, TCp), jnp.float32))              # tap accumulator

    if bn:
        out_shape = (jax.ShapeDtypeStruct((B, Ho * Wo, Cp), jnp.bfloat16),
                     jax.ShapeDtypeStruct((B, n_rt, 2, Cp), jnp.float32))
        out_specs = (pl.BlockSpec((1, n_tile, TCp), lambda b, r, j: (b, r, j)),
                     pl.BlockSpec((1, 1, 2, TCp), lambda b, r, j: (b, r, 0, j)))
    else:
        out_shape = jax.ShapeDtypeStruct((B, Cp, Ho * Wo), jnp.float32)
        out_specs = pl.BlockSpec((1, TCp, n_tile), lambda b, r, j: (b, j, r))

    res = pl.pallas_call(
        kernel,
        out_shape=out_shape,
        grid_spec=pltpu.PrefetchScalarGridSpec(
            num_scalar_prefetch=0,
            grid=(B, n_rt, n_ct),
            in_specs=in_specs,
            out_specs=out_specs,
            scratch_shapes=scratch),
        compiler_params=pltpu.CompilerParams(
            # Cout-tile axis must be "arbitrary": the pad/im2col scratch is built
            # only at j == 0 and reused by the remaining Cout tiles of this (b, r).
            dimension_semantics=("parallel", "parallel", "arbitrary"),
            vmem_limit_bytes=vlimit),
    )(*args)

    if bn:
        y_int, stats = res
        # Exact cross-tile combination of per-tile (sum, centered M2) -> mean / var
        tile_n = float(n_tile)
        total_n = float(B * Ho * Wo)
        sums = stats[:, :, 0, :].reshape(-1, Cp)
        m2s = stats[:, :, 1, :].reshape(-1, Cp)
        mean = jnp.sum(sums, axis=0) / total_n
        tile_mean = sums / tile_n
        m2 = jnp.sum(m2s, axis=0) + tile_n * jnp.sum(
            jnp.square(tile_mean - mean[None, :]), axis=0)
        var = jnp.maximum(m2 / total_n, 0.0)

        gp = gamma if Cp == Cout else jnp.pad(gamma, (0, Cp - Cout))
        bp = beta if Cp == Cout else jnp.pad(beta, (0, Cp - Cout))
        scale = gp * jax.lax.rsqrt(var + EPS)
        shift = bp - mean * scale

        y = pl.pallas_call(
            functools.partial(_scale_shift_kernel, relu),
            out_shape=jax.ShapeDtypeStruct((B, Cp, Ho * Wo), jnp.float32),
            grid_spec=pltpu.PrefetchScalarGridSpec(
                num_scalar_prefetch=0,
                grid=(B, n_rt, n_ct),
                in_specs=[pl.BlockSpec((1, n_tile, TCp), lambda b, r, j: (b, r, j)),
                          pl.BlockSpec((1, TCp), lambda b, r, j: (0, j)),
                          pl.BlockSpec((1, TCp), lambda b, r, j: (0, j))],
                out_specs=pl.BlockSpec((1, TCp, n_tile), lambda b, r, j: (b, j, r))),
            compiler_params=pltpu.CompilerParams(
                dimension_semantics=("parallel", "parallel", "parallel"),
                vmem_limit_bytes=vlimit),
        )(y_int, scale.reshape(1, Cp).astype(jnp.float32),
          shift.reshape(1, Cp).astype(jnp.float32))
    else:
        y = res

    y = y.reshape(B, Cp, Ho, Wo)          # already channel-major (transposed in-kernel)
    if Cp != Cout:
        y = y[:, :Cout]
    return y


# ---------------------------- pure-JAX reference ----------------------------- #

def ref_basic_conv(x, w_oihw, bias, gamma, beta, *,
                   stride, padding, dilation, relu, bn):
    # Same math contract as the kernel: bf16 operands, f32 accumulation.
    y = jax.lax.conv_general_dilated(
        x.astype(jnp.bfloat16), w_oihw.astype(jnp.bfloat16),
        window_strides=(stride, stride),
        padding=((padding, padding), (padding, padding)),
        rhs_dilation=(dilation, dilation),
        dimension_numbers=("NCHW", "OIHW", "NCHW"),
        preferred_element_type=jnp.float32)
    if bias is not None:
        y = y + bias.reshape(1, -1, 1, 1)
    if bn:
        mean = jnp.mean(y, axis=(0, 2, 3), keepdims=True)
        var = jnp.mean(jnp.square(y - mean), axis=(0, 2, 3), keepdims=True)
        y = (y - mean) * jax.lax.rsqrt(var + EPS)
        y = y * gamma.reshape(1, -1, 1, 1) + beta.reshape(1, -1, 1, 1)
    if relu:
        y = jnp.maximum(y, 0.0)
    return y


if __name__ == "__main__":
    key = jax.random.PRNGKey(0)
    kx, kw, kb, kg, kx3, kw3, kb3 = jax.random.split(key, 7)

    # Config 1: BasicConv(4, 8, kernel_size=3, padding=1) defaults (relu=True, bn=False, bias=False)
    B, Cin, H, W = 2, 4, 16, 16
    Cout, K = 8, 3
    x = jax.random.normal(kx, (B, Cin, H, W), jnp.float32)
    w = jax.random.normal(kw, (Cout, Cin, K, K), jnp.float32) * 0.1      # OIHW like nn.Conv2d
    bias = jax.random.normal(kb, (Cout,), jnp.float32) * 0.1
    gamma = 1.0 + 0.1 * jax.random.normal(kg, (Cout,), jnp.float32)
    beta = 0.05 * jnp.ones((Cout,), jnp.float32)

    fwd1 = jax.jit(functools.partial(basic_conv_forward, kernel_size=K, stride=1,
                                     padding=1, dilation=1, relu=True, bn=False))
    out1 = jax.block_until_ready(fwd1(x, w, None, None, None))
    assert out1.shape == (B, Cout, H, W), out1.shape
    ref1 = ref_basic_conv(x, w, None, None, None, stride=1, padding=1, dilation=1,
                          relu=True, bn=False)
    err1 = float(jnp.max(jnp.abs(out1 - ref1)))
    assert jnp.allclose(out1, ref1, rtol=2e-3, atol=2e-3), err1

    # Config 2: bn=True (training-mode batch stats) + bias=True (bias is BN-cancelled).
    fwd2 = jax.jit(functools.partial(basic_conv_forward, kernel_size=K, stride=1,
                                     padding=1, dilation=1, relu=True, bn=True))
    out2 = jax.block_until_ready(fwd2(x, w, bias, gamma, beta))
    assert out2.shape == (B, Cout, H, W), out2.shape
    ref2 = ref_basic_conv(x, w, bias, gamma, beta, stride=1, padding=1, dilation=1,
                          relu=True, bn=True)
    err2 = float(jnp.max(jnp.abs(out2 - ref2)))
    # slightly looser tolerance: the inter-pass activation is stored in bf16 (BN renormalizes)
    assert jnp.allclose(out2, ref2, rtol=5e-3, atol=5e-3), err2

    # Config 3: Cin >= 128 exercises the tap-accumulation (no im2col) MXU path + bias.
    B3, Cin3, H3, Cout3 = 1, 128, 16, 128
    x3 = jax.random.normal(kx3, (B3, Cin3, H3, H3), jnp.float32)
    w3 = jax.random.normal(kw3, (Cout3, Cin3, K, K), jnp.float32) * 0.05
    b3 = jax.random.normal(kb3, (Cout3,), jnp.float32) * 0.1
    fwd3 = jax.jit(functools.partial(basic_conv_forward, kernel_size=K, stride=1,
                                     padding=1, dilation=1, relu=True, bn=False))
    out3 = jax.block_until_ready(fwd3(x3, w3, b3, None, None))
    assert out3.shape == (B3, Cout3, H3, H3), out3.shape
    ref3 = ref_basic_conv(x3, w3, b3, None, None, stride=1, padding=1, dilation=1,
                          relu=True, bn=False)
    err3 = float(jnp.max(jnp.abs(out3 - ref3)))
    assert jnp.allclose(out3, ref3, rtol=2e-3, atol=2e-3), err3

    print("KERNEL_OK")
</pallas_src>

<mosaic_0001>
module attributes {stable_mosaic.version = 11 : i64} {
  func.func @kernel(%arg0: i32, %arg1: i32, %arg2: i32, %arg3: memref<1x16x16x4xbf16, #tpu.memory_space<vmem>>, %arg4: memref<36x128xbf16, #tpu.memory_space<vmem>>, %arg5: memref<1x128x128xf32, #tpu.memory_space<vmem>>, %arg6: memref<18x18x4xbf16, #tpu.memory_space<vmem>>, %arg7: memref<128x36xbf16, #tpu.memory_space<vmem>>) attributes {dimension_semantics = [#tpu.dimension_semantics<parallel>, #tpu.dimension_semantics<parallel>, #tpu.dimension_semantics<arbitrary>], iteration_bounds = array<i64: 2, 2, 1>, scalar_prefetch = 0 : i64, scratch_operands = 2 : i64, tpu.core_type = #tpu.core_type<tc>, window_params = [{transform_indices = @transform_0, window_bounds = array<i64: 1, 16, 16, 4>}, {transform_indices = @transform_1, window_bounds = array<i64: 36, 128>}, {transform_indices = @transform_2, window_bounds = array<i64: 1, 128, 128>}]} {
    %c8_i32 = arith.constant 8 : i32
    %0 = arith.muli %arg1, %c8_i32 : i32
    %1 = tpu.assume_multiple %0, 8 : i32
    %c0_i32 = arith.constant 0 : i32
    %2 = arith.cmpi eq, %arg2, %c0_i32 : i32
    %3 = arith.extui %2 : i1 to i32
    %c0_i32_0 = arith.constant 0 : i32
    %4 = arith.cmpi ne, %3, %c0_i32_0 : i32
    scf.if %4 {
      %cst_8 = arith.constant 0.000000e+00 : bf16
      %14 = vector.broadcast %cst_8 : bf16 to vector<18x18x4xbf16>
      %c0_9 = arith.constant 0 : index
      %c0_10 = arith.constant 0 : index
      %c0_11 = arith.constant 0 : index
      %15 = vector.load %arg6[%c0_9, %c0_10, %c0_11] : memref<18x18x4xbf16, #tpu.memory_space<vmem>>, vector<18x18x4xbf16>
      tpu.vector_store %arg6[%c0_9, %c0_10, %c0_11], %14 {strides = array<i32>} : memref<18x18x4xbf16, #tpu.memory_space<vmem>>, vector<18x18x4xbf16>,
      %c0_12 = arith.constant 0 : index
      %c0_13 = arith.constant 0 : index
      %c0_14 = arith.constant 0 : index
      %c0_15 = arith.constant 0 : index
      %16 = vector.load %arg3[%c0_12, %c0_13, %c0_14, %c0_15] : memref<1x16x16x4xbf16, #tpu.memory_space<vmem>>, vector<1x16x16x4xbf16>
      %17 = vector.shape_cast %16 : vector<1x16x16x4xbf16> to vector<16x16x4xbf16>
      %c1 = arith.constant 1 : index
      %c1_16 = arith.constant 1 : index
      %c0_17 = arith.constant 0 : index
      %18 = vector.load %arg6[%c1, %c1_16, %c0_17] : memref<18x18x4xbf16, #tpu.memory_space<vmem>>, vector<16x16x4xbf16>
      tpu.vector_store %arg6[%c1, %c1_16, %c0_17], %17 {strides = array<i32>} : memref<18x18x4xbf16, #tpu.memory_space<vmem>>, vector<16x16x4xbf16>,
      %c0_i32_18 = arith.constant 0 : i32
      %19 = arith.addi %1, %c0_i32_18 : i32
      %20 = arith.index_cast %19 : i32 to index
      %c0_19 = arith.constant 0 : index
      %c0_20 = arith.constant 0 : index
      %21 = vector.load %arg6[%20, %c0_19, %c0_20] : memref<18x18x4xbf16, #tpu.memory_space<vmem>>, vector<8x16x4xbf16>
      %22 = vector.shape_cast %21 : vector<8x16x4xbf16> to vector<128x4xbf16>
      %c0_21 = arith.constant 0 : index
      %c0_22 = arith.constant 0 : index
      %23 = vector.load %arg7[%c0_21, %c0_22] : memref<128x36xbf16, #tpu.memory_space<vmem>>, vector<128x4xbf16>
      tpu.vector_store %arg7[%c0_21, %c0_22], %22 {strides = array<i32>} : memref<128x36xbf16, #tpu.memory_space<vmem>>, vector<128x4xbf16>,
      %c0_i32_23 = arith.constant 0 : i32
      %24 = arith.addi %1, %c0_i32_23 : i32
      %25 = arith.index_cast %24 : i32 to index
      %c1_24 = arith.constant 1 : index
      %c0_25 = arith.constant 0 : index
      %26 = vector.load %arg6[%25, %c1_24, %c0_25] : memref<18x18x4xbf16, #tpu.memory_space<vmem>>, vector<8x16x4xbf16>
      %27 = vector.shape_cast %26 : vector<8x16x4xbf16> to vector<128x4xbf16>
      %c0_26 = arith.constant 0 : index
      %c4 = arith.constant 4 : index
      %28 = vector.load %arg7[%c0_26, %c4] : memref<128x36xbf16, #tpu.memory_space<vmem>>, vector<128x4xbf16>
      tpu.vector_store %arg7[%c0_26, %c4], %27 {strides = array<i32>} : memref<128x36xbf16, #tpu.memory_space<vmem>>, vector<128x4xbf16>,
      %c0_i32_27 = arith.constant 0 : i32
      %29 = arith.addi %1, %c0_i32_27 : i32
      %30 = arith.index_cast %29 : i32 to index
      %c2 = arith.constant 2 : index
      %c0_28 = arith.constant 0 : index
      %31 = vector.load %arg6[%30, %c2, %c0_28] : memref<18x18x4xbf16, #tpu.memory_space<vmem>>, vector<8x16x4xbf16>
      %32 = vector.shape_cast %31 : vector<8x16x4xbf16> to vector<128x4xbf16>
      %c0_29 = arith.constant 0 : index
      %c8 = arith.constant 8 : index
      %33 = vector.load %arg7[%c0_29, %c8] : memref<128x36xbf16, #tpu.memory_space<vmem>>, vector<128x4xbf16>
      tpu.vector_store %arg7[%c0_29, %c8], %32 {strides = array<i32>} : memref<128x36xbf16, #tpu.memory_space<vmem>>, vector<128x4xbf16>,
      %c1_i32 = arith.constant 1 : i32
      %34 = arith.addi %1, %c1_i32 : i32
      %35 = arith.index_cast %34 : i32 to index
      %c0_30 = arith.constant 0 : index
      %c0_31 = arith.constant 0 : index
      %36 = vector.load %arg6[%35, %c0_30, %c0_31] : memref<18x18x4xbf16, #tpu.memory_space<vmem>>, vector<8x16x4xbf16>
      %37 = vector.shape_cast %36 : vector<8x16x4xbf16> to vector<128x4xbf16>
      %c0_32 = arith.constant 0 : index
      %c12 = arith.constant 12 : index
      %38 = vector.load %arg7[%c0_32, %c12] : memref<128x36xbf16, #tpu.memory_space<vmem>>, vector<128x4xbf16>
      tpu.vector_store %arg7[%c0_32, %c12], %37 {strides = array<i32>} : memref<128x36xbf16, #tpu.memory_space<vmem>>, vector<128x4xbf16>,
      %c1_i32_33 = arith.constant 1 : i32
      %39 = arith.addi %1, %c1_i32_33 : i32
      %40 = arith.index_cast %39 : i32 to index
      %c1_34 = arith.constant 1 : index
      %c0_35 = arith.constant 0 : index
      %41 = vector.load %arg6[%40, %c1_34, %c0_35] : memref<18x18x4xbf16, #tpu.memory_space<vmem>>, vector<8x16x4xbf16>
      %42 = vector.shape_cast %41 : vector<8x16x4xbf16> to vector<128x4xbf16>
      %c0_36 = arith.constant 0 : index
      %c16 = arith.constant 16 : index
      %43 = vector.load %arg7[%c0_36, %c16] : memref<128x36xbf16, #tpu.memory_space<vmem>>, vector<128x4xbf16>
      tpu.vector_store %arg7[%c0_36, %c16], %42 {strides = array<i32>} : memref<128x36xbf16, #tpu.memory_space<vmem>>, vector<128x4xbf16>,
      %c1_i32_37 = arith.constant 1 : i32
      %44 = arith.addi %1, %c1_i32_37 : i32
      %45 = arith.index_cast %44 : i32 to index
      %c2_38 = arith.constant 2 : index
      %c0_39 = arith.constant 0 : index
      %46 = vector.load %arg6[%45, %c2_38, %c0_39] : memref<18x18x4xbf16, #tpu.memory_space<vmem>>, vector<8x16x4xbf16>
      %47 = vector.shape_cast %46 : vector<8x16x4xbf16> to vector<128x4xbf16>
      %c0_40 = arith.constant 0 : index
      %c20 = arith.constant 20 : index
      %48 = vector.load %arg7[%c0_40, %c20] : memref<128x36xbf16, #tpu.memory_space<vmem>>, vector<128x4xbf16>
      tpu.vector_store %arg7[%c0_40, %c20], %47 {strides = array<i32>} : memref<128x36xbf16, #tpu.memory_space<vmem>>, vector<128x4xbf16>,
      %c2_i32 = arith.constant 2 : i32
      %49 = arith.addi %1, %c2_i32 : i32
      %50 = arith.index_cast %49 : i32 to index
      %c0_41 = arith.constant 0 : index
      %c0_42 = arith.constant 0 : index
      %51 = vector.load %arg6[%50, %c0_41, %c0_42] : memref<18x18x4xbf16, #tpu.memory_space<vmem>>, vector<8x16x4xbf16>
      %52 = vector.shape_cast %51 : vector<8x16x4xbf16> to vector<128x4xbf16>
      %c0_43 = arith.constant 0 : index
      %c24 = arith.constant 24 : index
      %53 = vector.load %arg7[%c0_43, %c24] : memref<128x36xbf16, #tpu.memory_space<vmem>>, vector<128x4xbf16>
      tpu.vector_store %arg7[%c0_43, %c24], %52 {strides = array<i32>} : memref<128x36xbf16, #tpu.memory_space<vmem>>, vector<128x4xbf16>,
      %c2_i32_44 = arith.constant 2 : i32
      %54 = arith.addi %1, %c2_i32_44 : i32
      %55 = arith.index_cast %54 : i32 to index
      %c1_45 = arith.constant 1 : index
      %c0_46 = arith.constant 0 : index
      %56 = vector.load %arg6[%55, %c1_45, %c0_46] : memref<18x18x4xbf16, #tpu.memory_space<vmem>>, vector<8x16x4xbf16>
      %57 = vector.shape_cast %56 : vector<8x16x4xbf16> to vector<128x4xbf16>
      %c0_47 = arith.constant 0 : index
      %c28 = arith.constant 28 : index
      %58 = vector.load %arg7[%c0_47, %c28] : memref<128x36xbf16, #tpu.memory_space<vmem>>, vector<128x4xbf16>
      tpu.vector_store %arg7[%c0_47, %c28], %57 {strides = array<i32>} : memref<128x36xbf16, #tpu.memory_space<vmem>>, vector<128x4xbf16>,
      %c2_i32_48 = arith.constant 2 : i32
      %59 = arith.addi %1, %c2_i32_48 : i32
      %60 = arith.index_cast %59 : i32 to index
      %c2_49 = arith.constant 2 : index
      %c0_50 = arith.constant 0 : index
      %61 = vector.load %arg6[%60, %c2_49, %c0_50] : memref<18x18x4xbf16, #tpu.memory_space<vmem>>, vector<8x16x4xbf16>
      %62 = vector.shape_cast %61 : vector<8x16x4xbf16> to vector<128x4xbf16>
      %c0_51 = arith.constant 0 : index
      %c32 = arith.constant 32 : index
      %63 = vector.load %arg7[%c0_51, %c32] : memref<128x36xbf16, #tpu.memory_space<vmem>>, vector<128x4xbf16>
      tpu.vector_store %arg7[%c0_51, %c32], %62 {strides = array<i32>} : memref<128x36xbf16, #tpu.memory_space<vmem>>, vector<128x4xbf16>,
    } else {
    }
    %c0 = arith.constant 0 : index
    %c0_1 = arith.constant 0 : index
    %5 = vector.load %arg7[%c0, %c0_1] : memref<128x36xbf16, #tpu.memory_space<vmem>>, vector<128x36xbf16>
    %c0_2 = arith.constant 0 : index
    %c0_3 = arith.constant 0 : index
    %6 = vector.load %arg4[%c0_2, %c0_3] : memref<36x128xbf16, #tpu.memory_space<vmem>>, vector<36x128xbf16>
    %cst = arith.constant dense<0.000000e+00> : vector<128x128xf32>
    %7 = tpu.matmul %5, %6, %cst {dimension_numbers = #tpu.dot_dimension_numbers<[1], [0], [0], [1], [0, 0, 1, 1], [], []>} : vector<128x36xbf16>, vector<36x128xbf16>, vector<128x128xf32> -> vector<128x128xf32>
    %cst_4 = arith.constant 0.000000e+00 : f32
    %8 = vector.broadcast %cst_4 : f32 to vector<128x128xf32>
    %9 = arith.maximumf %7, %8 : vector<128x128xf32>
    %10 = tpu.transpose %9, [1, 0] : vector<128x128xf32> -> vector<128x128xf32>
    %c0_5 = arith.constant 0 : index
    %c0_6 = arith.constant 0 : index
    %c0_7 = arith.constant 0 : index
    %11 = vector.load %arg5[%c0_5, %c0_6, %c0_7] : memref<1x128x128xf32, #tpu.memory_space<vmem>>, vector<1x128x128xf32>
    %12 = vector.shape_cast %11 : vector<1x128x128xf32> to vector<128x128xf32>
    %13 = vector.shape_cast %10 : vector<128x128xf32> to vector<1x128x128xf32>
    tpu.vector_store %arg5[%c0_5, %c0_6, %c0_7], %13 {strides = array<i32>} : memref<1x128x128xf32, #tpu.memory_space<vmem>>, vector<1x128x128xf32>,
    return
  }
  func.func @transform_0(%arg0: i32, %arg1: i32, %arg2: i32) -> (i32, i32, i32, i32) {
    %c0_i32 = arith.constant 0 : i32
    %c0_i32_0 = arith.constant 0 : i32
    %c0_i32_1 = arith.constant 0 : i32
    %c0_i32_2 = arith.constant 0 : i32
    return %arg0, %c0_i32, %c0_i32_0, %c0_i32_1 : i32, i32, i32, i32
  }
  func.func @transform_1(%arg0: i32, %arg1: i32, %arg2: i32) -> (i32, i32) {
    %c0_i32 = arith.constant 0 : i32
    %c0_i32_0 = arith.constant 0 : i32
    return %c0_i32, %arg2 : i32, i32
  }
  func.func @transform_2(%arg0: i32, %arg1: i32, %arg2: i32) -> (i32, i32, i32) {
    %c0_i32 = arith.constant 0 : i32
    return %arg0, %arg2, %arg1 : i32, i32, i32
  }
}

</mosaic_0001>

<llo_original>
// kernel: basic_conv_forward.1
$region0: #{basic_conv_forward.1}
  #allocation0 [shape = 'u32[]', space=smem, size = 0x4, offset = 0x4, fixed_abs, tag = 'smem constant byte address 0x4 - core index']
  #allocation1 [shape = 'u32[144,128]{1,0:T(1,128)}', space=vmem, size = 0x12000, scoped, tag = 'internal scratch']
  #allocation2 [shape = 'bf16[18,18,4]{2,1,0:T(8,128)(2,1)}', space=vmem, size = 0x1b000, scoped, tag = 'scratch operand']
  #allocation3 [shape = 'bf16[128,36]{1,0:T(16,128)(2,1)}', space=vmem, size = 0x8000, scoped, tag = 'scratch operand']
  %s0 = inlined_call_operand.vmem [shape: bf16[2,16,16,4], index: 0, kind: input, shape index: {}]
  %s1 = inlined_call_operand.vmem [shape: bf16[36,128], index: 1, kind: input, shape index: {}]
  %s2 = inlined_call_operand.vmem [shape: f32[2,128,256], index: 2, kind: output, shape index: {}]
  %s3 = sld [smem:[#allocation0]]
  $region79: #{basic_conv_forward.1} parent=0
    _
  %s5 = ssub.s32 1, %s3
  %s6 = scalar_select 0, %s5, %s3
  $region1: #{basic_conv_forward.1} parent=0
    #allocation4 [shape = 'u8[131072]{0}', space=vmem, size = 0x20000, scoped, tag = 'output window, operand 0']
    loop: start=0, step=1, limit=6
    $region2: #{basic_conv_forward.1} parent=1 // loop_pre_header
      _
    $region3: #{basic_conv_forward.1} parent=1 // loop_header
      %s8 = sphi 0, %s12
      %p9 = scmp.ge.s32.totalorder %s8, 6
      %s15 = sphi 0, %s34
      %s16 = sphi 0, %s30
      %s17 = sphi 0, %s26
      %s18 = sphi 0, %s15
      %s19 = sphi 0, %s16
      %s20 = sphi 0, %s17
      %s21 = sphi 0, %s18
      %s22 = sphi 0, %s19
      %s23 = sphi 0, %s20
      %s37 = sphi 0, %s39
      %s40 = sphi 0, %s37
      %s41 = sphi 0, %s40
      %s57 = sphi 0, %s41
      %s63 = sphi 0, %s65
      %s66 = sphi 0, %s63
      %s67 = sphi 0, %s66
      %s83 = sphi 0, %s67
      %s93 = sphi 0, %s95
      %s96 = sphi 0, %s93
      %s97 = sphi 0, %s96
      %s113 = sphi 0, %s97
    $region4: #{basic_conv_forward.1} parent=1 // loop_header_branch
      %11 = sbr.rel (%p9) target = $region8
    $region5: #{basic_conv_forward.1} parent=1 // loop_body
      %s13 = ssub.s32 %s8, 1
      %s14 = ssub.s32 %s8, 2
      %s24 = sadd.s32 1, %s17
      %p25 = scmp.ge.s32.totalorder %s24, 1
      %s26 = scalar_select %p25, 0, %s24
      %s27 = sadd.s32 1, %s16
      %s28 = scalar_select %p25, %s27, %s16
      %p29 = scmp.ge.s32.totalorder %s28, 2
      %s30 = scalar_select %p29, 0, %s28
      %s31 = sadd.s32 1, %s15
      %s32 = scalar_select %p29, %s31, %s15
      %p33 = scmp.ge.s32.totalorder %s32, 2
      %s34 = scalar_select %p33, 0, %s32
      %s35 = ssub.s32 %s15, %s34
      %p36 = scmp.eq.s32.totalorder %s35, 0
      %s38 = sadd.s32 %s37, 1
      %s39 = scalar_select %p36, %s37, %s38
      %p42 = pneg %p36
      %p43 = scmp.eq.s32.totalorder %s8, 3
      %p44 = por %p42, %p43
      %p45 = scmp.ne.s32.totalorder %s37, %s40
      %p46 = scmp.eq.s32.totalorder %s8, 0
      %p47 = por %p45, %p46
      %p48 = scmp.ne.s32.totalorder %s37, %s40
      %p49 = scmp.eq.s32.totalorder %s13, 3
      %p50 = por %p48, %p49
      %p51 = scmp.ne.s32.totalorder %s40, %s41
      %p52 = scmp.eq.s32.totalorder %s13, 0
      %p53 = por %p51, %p52
      %p54 = scmp.ne.s32.totalorder %s40, %s41
      %p55 = scmp.eq.s32.totalorder %s14, 3
      %p56 = por %p54, %p55
      %p58 = scmp.ne.s32.totalorder %s41, %s57
      %p59 = scmp.eq.s32.totalorder %s14, 0
      %p60 = por %p58, %p59
      %s61 = ssub.s32 %s17, %s26
      %p62 = scmp.eq.s32.totalorder %s61, 0
      %s64 = sadd.s32 %s63, 1
      %s65 = scalar_select %p62, %s63, %s64
      %p68 = pneg %p62
      %p69 = scmp.eq.s32.totalorder %s8, 3
      %p70 = por %p68, %p69
      %p71 = scmp.ne.s32.totalorder %s63, %s66
      %p72 = scmp.eq.s32.totalorder %s8, 0
      %p73 = por %p71, %p72
      %p74 = scmp.ne.s32.totalorder %s63, %s66
      %p75 = scmp.eq.s32.totalorder %s13, 3
      %p76 = por %p74, %p75
      %p77 = scmp.ne.s32.totalorder %s66, %s67
      %p78 = scmp.eq.s32.totalorder %s13, 0
      %p79 = por %p77, %p78
      %p80 = scmp.ne.s32.totalorder %s66, %s67
      %p81 = scmp.eq.s32.totalorder %s14, 3
      %p82 = por %p80, %p81
      %p84 = scmp.ne.s32.totalorder %s67, %s83
      %p85 = scmp.eq.s32.totalorder %s14, 0
      %p86 = por %p84, %p85
      %s87 = ssub.s32 %s15, %s34
      %s88 = ssub.s32 %s17, %s26
      %s89 = sor.u32 %s87, %s88
      %s90 = ssub.s32 %s16, %s30
      %s91 = sor.u32 %s89, %s90
      %p92 = scmp.eq.s32.totalorder %s91, 0
      %s94 = sadd.s32 %s93, 1
      %s95 = scalar_select %p92, %s93, %s94
      %p98 = pneg %p92
      %p99 = scmp.eq.s32.totalorder %s8, 3
      %p100 = por %p98, %p99
      %p101 = scmp.ne.s32.totalorder %s93, %s96
      %p102 = scmp.eq.s32.totalorder %s8, 0
      %p103 = por %p101, %p102
      %p104 = scmp.ne.s32.totalorder %s93, %s96
      %p105 = scmp.eq.s32.totalorder %s13, 3
      %p106 = por %p104, %p105
      %p107 = scmp.ne.s32.totalorder %s96, %s97
      %p108 = scmp.eq.s32.totalorder %s13, 0
      %p109 = por %p107, %p108
      %p110 = scmp.ne.s32.totalorder %s96, %s97
      %p111 = scmp.eq.s32.totalorder %s14, 3
      %p112 = por %p110, %p111
      %p114 = scmp.ne.s32.totalorder %s97, %s113
      %p115 = scmp.eq.s32.totalorder %s14, 0
      %p116 = por %p114, %p115
      %p117 = scmp.le.s32.totalorder 1, %s8
      %p118 = scmp.lt.s32.totalorder %s8, 5
      %p119 = pnand %p117, %p118
      %p120 = pneg %p119
      // Predicated region
      $region9: #{basic_conv_forward.1} parent=5 // pred_check
        _
      $region10: #{basic_conv_forward.1} parent=5 // pred_check_branch
        %122 = sbr.rel (%p119) target = $region12
      $region11: #{basic_conv_forward.1} parent=5 // pred_region
        %s123 = ssub.s32 %s8, 1
        // Predicated region
        $region13: #{basic_conv_forward.1} parent=11 // pred_check
          %p124 = pneg %p79
        $region14: #{basic_conv_forward.1} parent=11 // pred_check_branch
          %126 = sbr.rel (%p124) target = $region16
        $region15: #{basic_conv_forward.1} parent=11 // pred_region
          %p127 = scmp.lt.s32.totalorder %s20, 0
          %s128 = scalar_select %p127, %s20, 0
          %s129 = smul.addr %s128, 4
          %s130 = scalar_lea.vmem %s1, %s129
        $region16: #{basic_conv_forward.1} parent=11 // pred_fallthru
          _
      $region12: #{basic_conv_forward.1} parent=5 // pred_fallthru
        _
      %p131 = scmp.lt.s32.totalorder %s8, 4
      // Predicated region
      $region17: #{basic_conv_forward.1} parent=5 // pred_check
        %p132 = pneg %p131
      $region18: #{basic_conv_forward.1} parent=5 // pred_check_branch
        %134 = sbr.rel (%p132) target = $region20
      $region19: #{basic_conv_forward.1} parent=5 // pred_region
        // Predicated region
        $region21: #{basic_conv_forward.1} parent=19 // pred_check
          %p135 = pneg %p47
        $region22: #{basic_conv_forward.1} parent=19 // pred_check_branch
          %137 = sbr.rel (%p135) target = $region24
        $region23: #{basic_conv_forward.1} parent=19 // pred_region
          %p138 = scmp.lt.s32.totalorder %s15, 1
          %s139 = scalar_select %p138, %s15, 1
          %s140 = smul.addr %s139, 32
          %s141 = smul.addr %s140, 4
          %s142 = scalar_lea.vmem %s0, %s141
        $region24: #{basic_conv_forward.1} parent=19 // pred_fallthru
          _
      $region20: #{basic_conv_forward.1} parent=5 // pred_fallthru
        _
      %p143 = scmp.le.s32.totalorder 1, %s8
      %p144 = scmp.lt.s32.totalorder %s8, 5
      %p145 = pnand %p143, %p144
      %p146 = pneg %p145
      // Predicated region
      $region25: #{basic_conv_forward.1} parent=5 // pred_check
        _
      $region26: #{basic_conv_forward.1} parent=5 // pred_check_branch
        %148 = sbr.rel (%p145) target = $region28
      $region27: #{basic_conv_forward.1} parent=5 // pred_region
        %s149 = ssub.s32 %s8, 1
        %p150 = scmp.lt.s32.totalorder %s18, 1
        %s151 = scalar_select %p150, %s18, 1
        %s152 = smul.addr %s151, 32
        %s153 = smul.addr %s152, 4
        %s154 = scalar_lea.vmem %s0, %s153
        %p155 = pneg %p53
        %p156 = pneg %p50
        %p157 = scmp.lt.s32.totalorder %s20, 0
        %s158 = scalar_select %p157, %s20, 0
        %s159 = smul.addr %s158, 4
        %s160 = scalar_lea.vmem %s1, %s159
        %p161 = pneg %p79
        %p162 = pneg %p76
        %p163 = pneg %p109
        %p164 = pneg %p106
        %s165 = sand.u32 %s96, 1
        %s166 = sand.u32 %s96, 1
        %s167 = smul.addr %s166, 128
        %s168 = scalar_lea.vmem [#allocation4], %s167
        %p169 = scmp.lt.s32.totalorder %s18, 1
        %s170 = scalar_select %p169, %s18, 1
        %s171 = smul.addr %s170, 32
        %s172 = smul.addr %s171, 4
        %s173 = scalar_lea.vmem %s0, %s172
        %p174 = scmp.lt.s32.totalorder %s20, 0
        %s175 = scalar_select %p174, %s20, 0
        %s176 = smul.addr %s175, 4
        %s177 = scalar_lea.vmem %s1, %s176
        %s178 = smul.u32 16, %s20
        %s180 = smul.u32 %s19, 8
        %p181 = scmp.eq.s32.totalorder %s20, 0
        // Predicated region
        $region29: #{basic_conv_forward.1} parent=27 // pred_check
          %p182 = pneg %p181
        $region30: #{basic_conv_forward.1} parent=27 // pred_check_branch
          %184 = sbr.rel (%p182) target = $region32
        $region31: #{basic_conv_forward.1} parent=27 // pred_region
          %vm185 = vcmask 27648
          %186 = vst.msk [vmem:[#allocation2] sm:$0xf] %vm185, 0
          %187 = vst.msk [vmem:[#allocation2 + $0x4] sm:$0xf] %vm185, 0
          %vm188 = vcmask 24576
          %189 = vst.msk [vmem:[#allocation2 + $0x8] sm:$0x1] %vm188, 0
          %190 = vst.msk [vmem:[#allocation2 + $0xc] sm:$0xf] %vm185, 0
          %191 = vst.msk [vmem:[#allocation2 + $0x10] sm:$0xf] %vm185, 0
          %192 = vst.msk [vmem:[#allocation2 + $0x14] sm:$0x1] %vm188, 0
          %193 = vst.msk [vmem:[#allocation2 + $0x18] sm:$0xf] %vm185, 0
          %194 = vst.msk [vmem:[#allocation2 + $0x1c] sm:$0xf] %vm185, 0
          %195 = vst.msk [vmem:[#allocation2 + $0x20] sm:$0x1] %vm188, 0
          %196 = vst.msk [vmem:[#allocation2 + $0x24] sm:$0xf] %vm185, 0
          %197 = vst.msk [vmem:[#allocation2 + $0x28] sm:$0xf] %vm185, 0
          %198 = vst.msk [vmem:[#allocation2 + $0x2c] sm:$0x1] %vm188, 0
          %199 = vst.msk [vmem:[#allocation2 + $0x30] sm:$0xf] %vm185, 0
          %200 = vst.msk [vmem:[#allocation2 + $0x34] sm:$0xf] %vm185, 0
          %201 = vst.msk [vmem:[#allocation2 + $0x38] sm:$0x1] %vm188, 0
          %202 = vst.msk [vmem:[#allocation2 + $0x3c] sm:$0xf] %vm185, 0
          %203 = vst.msk [vmem:[#allocation2 + $0x40] sm:$0xf] %vm185, 0
          %204 = vst.msk [vmem:[#allocation2 + $0x44] sm:$0x1] %vm188, 0
          %205 = vst.msk [vmem:[#allocation2 + $0x48] sm:$0xf] %vm185, 0
          %206 = vst.msk [vmem:[#allocation2 + $0x4c] sm:$0xf] %vm185, 0
          %207 = vst.msk [vmem:[#allocation2 + $0x50] sm:$0x1] %vm188, 0
          %208 = vst.msk [vmem:[#allocation2 + $0x54] sm:$0xf] %vm185, 0
          %209 = vst.msk [vmem:[#allocation2 + $0x58] sm:$0xf] %vm185, 0
          %210 = vst.msk [vmem:[#allocation2 + $0x5c] sm:$0x1] %vm188, 0
          %211 = vst.msk [vmem:[#allocation2 + $0x60] sm:$0xf] %vm185, 0
          %212 = vst.msk [vmem:[#allocation2 + $0x64] sm:$0xf] %vm185, 0
          %213 = vst.msk [vmem:[#allocation2 + $0x68] sm:$0x1] %vm188, 0
          %214 = vst.msk [vmem:[#allocation2 + $0x6c] sm:$0xf] %vm185, 0
          %215 = vst.msk [vmem:[#allocation2 + $0x70] sm:$0xf] %vm185, 0
          %216 = vst.msk [vmem:[#allocation2 + $0x74] sm:$0x1] %vm188, 0
          %217 = vst.msk [vmem:[#allocation2 + $0x78] sm:$0xf] %vm185, 0
          %218 = vst.msk [vmem:[#allocation2 + $0x7c] sm:$0xf] %vm185, 0
          %219 = vst.msk [vmem:[#allocation2 + $0x80] sm:$0x1] %vm188, 0
          %220 = vst.msk [vmem:[#allocation2 + $0x84] sm:$0xf] %vm185, 0
          %221 = vst.msk [vmem:[#allocation2 + $0x88] sm:$0xf] %vm185, 0
          %222 = vst.msk [vmem:[#allocation2 + $0x8c] sm:$0x1] %vm188, 0
          %223 = vst.msk [vmem:[#allocation2 + $0x90] sm:$0xf] %vm185, 0
          %224 = vst.msk [vmem:[#allocation2 + $0x94] sm:$0xf] %vm185, 0
          %225 = vst.msk [vmem:[#allocation2 + $0x98] sm:$0x1] %vm188, 0
          %226 = vst.msk [vmem:[#allocation2 + $0x9c] sm:$0xf] %vm185, 0
          %227 = vst.msk [vmem:[#allocation2 + $0xa0] sm:$0xf] %vm185, 0
          %228 = vst.msk [vmem:[#allocation2 + $0xa4] sm:$0x1] %vm188, 0
          %229 = vst.msk [vmem:[#allocation2 + $0xa8] sm:$0xf] %vm185, 0
          %230 = vst.msk [vmem:[#allocation2 + $0xac] sm:$0xf] %vm185, 0
          %231 = vst.msk [vmem:[#allocation2 + $0xb0] sm:$0x1] %vm188, 0
          %232 = vst.msk [vmem:[#allocation2 + $0xb4] sm:$0xf] %vm185, 0
          %233 = vst.msk [vmem:[#allocation2 + $0xb8] sm:$0xf] %vm185, 0
          %234 = vst.msk [vmem:[#allocation2 + $0xbc] sm:$0x1] %vm188, 0
          %235 = vst.msk [vmem:[#allocation2 + $0xc0] sm:$0xf] %vm185, 0
          %236 = vst.msk [vmem:[#allocation2 + $0xc4] sm:$0xf] %vm185, 0
          %237 = vst.msk [vmem:[#allocation2 + $0xc8] sm:$0x1] %vm188, 0
          %238 = vst.msk [vmem:[#allocation2 + $0xcc] sm:$0xf] %vm185, 0
          %239 = vst.msk [vmem:[#allocation2 + $0xd0] sm:$0xf] %vm185, 0
          %240 = vst.msk [vmem:[#allocation2 + $0xd4] sm:$0x1] %vm188, 0
          %v241 = vld [vmem:[%s173] sm:$0xf]
          %v242 = vld [vmem:[%s173 + $0x4] sm:$0xf]
          %v243 = vld [vmem:[%s173 + $0x8] sm:$0xf]
          %v244 = vld [vmem:[%s173 + $0xc] sm:$0xf]
          %v245 = vld [vmem:[%s173 + $0x10] sm:$0xf]
          %v246 = vld [vmem:[%s173 + $0x14] sm:$0xf]
          %v247 = vld [vmem:[%s173 + $0x18] sm:$0xf]
          %v248 = vld [vmem:[%s173 + $0x1c] sm:$0xf]
          %v249 = vld [vmem:[%s173 + $0x20] sm:$0xf]
          %v250 = vld [vmem:[%s173 + $0x24] sm:$0xf]
          %v251 = vld [vmem:[%s173 + $0x28] sm:$0xf]
          %v252 = vld [vmem:[%s173 + $0x2c] sm:$0xf]
          %v253 = vld [vmem:[%s173 + $0x30] sm:$0xf]
          %v254 = vld [vmem:[%s173 + $0x34] sm:$0xf]
          %v255 = vld [vmem:[%s173 + $0x38] sm:$0xf]
          %v256 = vld [vmem:[%s173 + $0x3c] sm:$0xf]
          %v257 = vld [vmem:[%s173 + $0x40] sm:$0xf]
          %v258 = vld [vmem:[%s173 + $0x44] sm:$0xf]
          %v259 = vld [vmem:[%s173 + $0x48] sm:$0xf]
          %v260 = vld [vmem:[%s173 + $0x4c] sm:$0xf]
          %v261 = vld [vmem:[%s173 + $0x50] sm:$0xf]
          %v262 = vld [vmem:[%s173 + $0x54] sm:$0xf]
          %v263 = vld [vmem:[%s173 + $0x58] sm:$0xf]
          %v264 = vld [vmem:[%s173 + $0x5c] sm:$0xf]
          %v265 = vld [vmem:[%s173 + $0x60] sm:$0xf]
          %v266 = vld [vmem:[%s173 + $0x64] sm:$0xf]
          %v267 = vld [vmem:[%s173 + $0x68] sm:$0xf]
          %v268 = vld [vmem:[%s173 + $0x6c] sm:$0xf]
          %v269 = vld [vmem:[%s173 + $0x70] sm:$0xf]
          %v270 = vld [vmem:[%s173 + $0x74] sm:$0xf]
          %v271 = vld [vmem:[%s173 + $0x78] sm:$0xf]
          %v272 = vld [vmem:[%s173 + $0x7c] sm:$0xf]
          %vm273 = vsmask.f32 256
          %vm274 = vsmask.f32 4368
          %vm275 = vmor %vm273, %vm274
          %v277 = vshrl.u32 %v241, 16
          %v279 = vrot.slane %v277, 7
          %v280 = vshll.u32 %v241, 16
          %v282 = vor.u32 %v279, %v280
          %v283 = vrot.slane %v279, 4
          %v285 = vshrl.u32 %v242, 16
          %v287 = vrot.slane %v285, 7
          %v288 = vshll.u32 %v242, 16
          %v290 = vor.u32 %v287, %v288
          %v291 = vsel %vm275, %v283, %v290
          %v292 = vrot.slane %v287, 4
          %v294 = vshrl.u32 %v243, 16
          %v296 = vrot.slane %v294, 7
          %v297 = vshll.u32 %v243, 16
          %v299 = vor.u32 %v296, %v297
          %v300 = vrot.slane %v296, 4
          %v302 = vshrl.u32 %v244, 16
          %v304 = vrot.slane %v302, 7
          %v305 = vshll.u32 %v244, 16
          %v307 = vor.u32 %v304, %v305
          %v308 = vsel %vm275, %v300, %v307
          %v309 = vrot.slane %v304, 4
          %v311 = vshrl.u32 %v245, 16
          %v313 = vrot.slane %v311, 7
          %v314 = vshll.u32 %v245, 16
          %v316 = vor.u32 %v313, %v314
          %v317 = vrot.slane %v313, 4
          %v319 = vshrl.u32 %v246, 16
          %v321 = vrot.slane %v319, 7
          %v322 = vshll.u32 %v246, 16
          %v324 = vor.u32 %v321, %v322
          %v325 = vsel %vm275, %v317, %v324
          %v326 = vrot.slane %v321, 4
          %v328 = vshrl.u32 %v247, 16
          %v330 = vrot.slane %v328, 7
          %v331 = vshll.u32 %v247, 16
          %v333 = vor.u32 %v330, %v331
          %v334 = vrot.slane %v330, 4
          %v336 = vshrl.u32 %v248, 16
          %v338 = vrot.slane %v336, 7
          %v339 = vshll.u32 %v248, 16
          %v341 = vor.u32 %v338, %v339
          %v342 = vsel %vm275, %v334, %v341
          %v343 = vrot.slane %v338, 4
          %v345 = vshrl.u32 %v249, 16
          %v347 = vrot.slane %v345, 7
          %v348 = vshll.u32 %v249, 16
          %v350 = vor.u32 %v347, %v348
          %v351 = vrot.slane %v347, 4
          %v353 = vshrl.u32 %v250, 16
          %v355 = vrot.slane %v353, 7
          %v356 = vshll.u32 %v250, 16
          %v358 = vor.u32 %v355, %v356
          %v359 = vsel %vm275, %v351, %v358
          %v360 = vrot.slane %v355, 4
          %v362 = vshrl.u32 %v251, 16
          %v364 = vrot.slane %v362, 7
          %v365 = vshll.u32 %v251, 16
          %v367 = vor.u32 %v364, %v365
          %v368 = vrot.slane %v364, 4
          %v370 = vshrl.u32 %v252, 16
          %v372 = vrot.slane %v370, 7
          %v373 = vshll.u32 %v252, 16
          %v375 = vor.u32 %v372, %v373
          %v376 = vsel %vm275, %v368, %v375
          %v377 = vrot.slane %v372, 4
          %v379 = vshrl.u32 %v253, 16
          %v381 = vrot.slane %v379, 7
          %v382 = vshll.u32 %v253, 16
          %v384 = vor.u32 %v381, %v382
          %v385 = vrot.slane %v381, 4
          %v387 = vshrl.u32 %v254, 16
          %v389 = vrot.slane %v387, 7
          %v390 = vshll.u32 %v254, 16
          %v392 = vor.u32 %v389, %v390
          %v393 = vsel %vm275, %v385, %v392
          %v394 = vrot.slane %v389, 4
          %v396 = vshrl.u32 %v255, 16
          %v398 = vrot.slane %v396, 7
          %v399 = vshll.u32 %v255, 16
          %v401 = vor.u32 %v398, %v399
          %v402 = vrot.slane %v398, 4
          %v404 = vshrl.u32 %v256, 16
          %v406 = vrot.slane %v404, 7
          %v407 = vshll.u32 %v256, 16
          %v409 = vor.u32 %v406, %v407
          %v410 = vsel %vm275, %v402, %v409
          %v411 = vrot.slane %v406, 4
          %v413 = vshrl.u32 %v257, 16
          %v415 = vrot.slane %v413, 7
          %v416 = vshll.u32 %v257, 16
          %v418 = vor.u32 %v415, %v416
          %v419 = vrot.slane %v415, 4
          %v421 = vshrl.u32 %v258, 16
          %v423 = vrot.slane %v421, 7
          %v424 = vshll.u32 %v258, 16
          %v426 = vor.u32 %v423, %v424
          %v427 = vsel %vm275, %v419, %v426
          %v428 = vrot.slane %v423, 4
          %v430 = vshrl.u32 %v259, 16
          %v432 = vrot.slane %v430, 7
          %v433 = vshll.u32 %v259, 16
          %v435 = vor.u32 %v432, %v433
          %v436 = vrot.slane %v432, 4
          %v438 = vshrl.u32 %v260, 16
          %v440 = vrot.slane %v438, 7
          %v441 = vshll.u32 %v260, 16
          %v443 = vor.u32 %v440, %v441
          %v444 = vsel %vm275, %v436, %v443
          %v445 = vrot.slane %v440, 4
          %v447 = vshrl.u32 %v261, 16
          %v449 = vrot.slane %v447, 7
          %v450 = vshll.u32 %v261, 16
          %v452 = vor.u32 %v449, %v450
          %v453 = vrot.slane %v449, 4
          %v455 = vshrl.u32 %v262, 16
          %v457 = vrot.slane %v455, 7
          %v458 = vshll.u32 %v262, 16
          %v460 = vor.u32 %v457, %v458
          %v461 = vsel %vm275, %v453, %v460
          %v462 = vrot.slane %v457, 4
          %v464 = vshrl.u32 %v263, 16
          %v466 = vrot.slane %v464, 7
          %v467 = vshll.u32 %v263, 16
          %v469 = vor.u32 %v466, %v467
          %v470 = vrot.slane %v466, 4
          %v472 = vshrl.u32 %v264, 16
          %v474 = vrot.slane %v472, 7
          %v475 = vshll.u32 %v264, 16
          %v477 = vor.u32 %v474, %v475
          %v478 = vsel %vm275, %v470, %v477
          %v479 = vrot.slane %v474, 4
          %v481 = vshrl.u32 %v265, 16
          %v483 = vrot.slane %v481, 7
          %v484 = vshll.u32 %v265, 16
          %v486 = vor.u32 %v483, %v484
          %v487 = vrot.slane %v483, 4
          %v489 = vshrl.u32 %v266, 16
          %v491 = vrot.slane %v489, 7
          %v492 = vshll.u32 %v266, 16
          %v494 = vor.u32 %v491, %v492
          %v495 = vsel %vm275, %v487, %v494
          %v496 = vrot.slane %v491, 4
          %v498 = vshrl.u32 %v267, 16
          %v500 = vrot.slane %v498, 7
          %v501 = vshll.u32 %v267, 16
          %v503 = vor.u32 %v500, %v501
          %v504 = vrot.slane %v500, 4
          %v506 = vshrl.u32 %v268, 16
          %v508 = vrot.slane %v506, 7
          %v509 = vshll.u32 %v268, 16
          %v511 = vor.u32 %v508, %v509
          %v512 = vsel %vm275, %v504, %v511
          %v513 = vrot.slane %v508, 4
          %v515 = vshrl.u32 %v269, 16
          %v517 = vrot.slane %v515, 7
          %v518 = vshll.u32 %v269, 16
          %v520 = vor.u32 %v517, %v518
          %v521 = vrot.slane %v517, 4
          %v523 = vshrl.u32 %v270, 16
          %v525 = vrot.slane %v523, 7
          %v526 = vshll.u32 %v270, 16
          %v528 = vor.u32 %v525, %v526
          %v529 = vsel %vm275, %v521, %v528
          %v530 = vrot.slane %v525, 4
          %v532 = vshrl.u32 %v271, 16
          %v534 = vrot.slane %v532, 7
          %v535 = vshll.u32 %v271, 16
          %v537 = vor.u32 %v534, %v535
          %v538 = vrot.slane %v534, 4
          %v540 = vshrl.u32 %v272, 16
          %v542 = vrot.slane %v540, 7
          %v543 = vshll.u32 %v272, 16
          %v545 = vor.u32 %v542, %v543
          %v546 = vsel %vm275, %v538, %v545
          %v547 = vrot.slane %v542, 4
          %s596 = scalar_lea.vmem [#allocation2], 12
          %vm597 = vcmask 27648
          %vm598 = vsmask.f32 7938
          %vm599 = vmand %vm597, %vm598
          %v600 = vld [vmem:[%s596] sm:$0xf]
          %v601 = vsel %vm599, %v282, %v600
          %602 = vst [vmem:[%s596] sm:$0xf] %v601
          %603 = vst.msk [vmem:[%s596 + $0x4] sm:$0xf] %vm185, %v291
          %vm604 = vcmask 24576
          %vm605 = vmand %vm604, %vm273
          %v606 = vld [vmem:[%s596 + $0x8] sm:$0x1]
          %v607 = vsel %vm605, %v292, %v606
          %608 = vst [vmem:[%s596 + $0x8] sm:$0x1] %v607
          %v609 = vld [vmem:[%s596 + $0xc] sm:$0xf]
          %v610 = vsel %vm599, %v299, %v609
          %611 = vst [vmem:[%s596 + $0xc] sm:$0xf] %v610
          %612 = vst.msk [vmem:[%s596 + $0x10] sm:$0xf] %vm185, %v308
          %v613 = vld [vmem:[%s596 + $0x14] sm:$0x1]
          %v614 = vsel %vm605, %v309, %v613
          %615 = vst [vmem:[%s596 + $0x14] sm:$0x1] %v614
          %v616 = vld [vmem:[%s596 + $0x18] sm:$0xf]
          %v617 = vsel %vm599, %v316, %v616
          %618 = vst [vmem:[%s596 + $0x18] sm:$0xf] %v617
          %619 = vst.msk [vmem:[%s596 + $0x1c] sm:$0xf] %vm185, %v325
          %v620 = vld [vmem:[%s596 + $0x20] sm:$0x1]
          %v621 = vsel %vm605, %v326, %v620
          %622 = vst [vmem:[%s596 + $0x20] sm:$0x1] %v621
          %v623 = vld [vmem:[%s596 + $0x24] sm:$0xf]
          %v624 = vsel %vm599, %v333, %v623
          %625 = vst [vmem:[%s596 + $0x24] sm:$0xf] %v624
          %626 = vst.msk [vmem:[%s596 + $0x28] sm:$0xf] %vm185, %v342
          %v627 = vld [vmem:[%s596 + $0x2c] sm:$0x1]
          %v628 = vsel %vm605, %v343, %v627
          %629 = vst [vmem:[%s596 + $0x2c] sm:$0x1] %v628
          %v630 = vld [vmem:[%s596 + $0x30] sm:$0xf]
          %v631 = vsel %vm599, %v350, %v630
          %632 = vst [vmem:[%s596 + $0x30] sm:$0xf] %v631
          %633 = vst.msk [vmem:[%s596 + $0x34] sm:$0xf] %vm185, %v359
          %v634 = vld [vmem:[%s596 + $0x38] sm:$0x1]
          %v635 = vsel %vm605, %v360, %v634
          %636 = vst [vmem:[%s596 + $0x38] sm:$0x1] %v635
          %v637 = vld [vmem:[%s596 + $0x3c] sm:$0xf]
          %v638 = vsel %vm599, %v367, %v637
          %639 = vst [vmem:[%s596 + $0x3c] sm:$0xf] %v638
          %640 = vst.msk [vmem:[%s596 + $0x40] sm:$0xf] %vm185, %v376
          %v641 = vld [vmem:[%s596 + $0x44] sm:$0x1]
          %v642 = vsel %vm605, %v377, %v641
          %643 = vst [vmem:[%s596 + $0x44] sm:$0x1] %v642
          %v644 = vld [vmem:[%s596 + $0x48] sm:$0xf]
          %v645 = vsel %vm599, %v384, %v644
          %646 = vst [vmem:[%s596 + $0x48] sm:$0xf] %v645
          %647 = vst.msk [vmem:[%s596 + $0x4c] sm:$0xf] %vm185, %v393
          %v648 = vld [vmem:[%s596 + $0x50] sm:$0x1]
          %v649 = vsel %vm605, %v394, %v648
          %650 = vst [vmem:[%s596 + $0x50] sm:$0x1] %v649
          %v651 = vld [vmem:[%s596 + $0x54] sm:$0xf]
          %v652 = vsel %vm599, %v401, %v651
          %653 = vst [vmem:[%s596 + $0x54] sm:$0xf] %v652
          %654 = vst.msk [vmem:[%s596 + $0x58] sm:$0xf] %vm185, %v410
          %v655 = vld [vmem:[%s596 + $0x5c] sm:$0x1]
          %v656 = vsel %vm605, %v411, %v655
          %657 = vst [vmem:[%s596 + $0x5c] sm:$0x1] %v656
          %v658 = vld [vmem:[%s596 + $0x60] sm:$0xf]
          %v659 = vsel %vm599, %v418, %v658
          %660 = vst [vmem:[%s596 + $0x60] sm:$0xf] %v659
          %661 = vst.msk [vmem:[%s596 + $0x64] sm:$0xf] %vm185, %v427
          %v662 = vld [vmem:[%s596 + $0x68] sm:$0x1]
          %v663 = vsel %vm605, %v428, %v662
          %664 = vst [vmem:[%s596 + $0x68] sm:$0x1] %v663
          %v665 = vld [vmem:[%s596 + $0x6c] sm:$0xf]
          %v666 = vsel %vm599, %v435, %v665
          %667 = vst [vmem:[%s596 + $0x6c] sm:$0xf] %v666
          %668 = vst.msk [vmem:[%s596 + $0x70] sm:$0xf] %vm185, %v444
          %v669 = vld [vmem:[%s596 + $0x74] sm:$0x1]
          %v670 = vsel %vm605, %v445, %v669
          %671 = vst [vmem:[%s596 + $0x74] sm:$0x1] %v670
          %v672 = vld [vmem:[%s596 + $0x78] sm:$0xf]
          %v673 = vsel %vm599, %v452, %v672
          %674 = vst [vmem:[%s596 + $0x78] sm:$0xf] %v673
          %675 = vst.msk [vmem:[%s596 + $0x7c] sm:$0xf] %vm185, %v461
          %v676 = vld [vmem:[%s596 + $0x80] sm:$0x1]
          %v677 = vsel %vm605, %v462, %v676
          %678 = vst [vmem:[%s596 + $0x80] sm:$0x1] %v677
          %v679 = vld [vmem:[%s596 + $0x84] sm:$0xf]
          %v680 = vsel %vm599, %v469, %v679
          %681 = vst [vmem:[%s596 + $0x84] sm:$0xf] %v680
          %682 = vst.msk [vmem:[%s596 + $0x88] sm:$0xf] %vm185, %v478
          %v683 = vld [vmem:[%s596 + $0x8c] sm:$0x1]
          %v684 = vsel %vm605, %v479, %v683
          %685 = vst [vmem:[%s596 + $0x8c] sm:$0x1] %v684
          %v686 = vld [vmem:[%s596 + $0x90] sm:$0xf]
          %v687 = vsel %vm599, %v486, %v686
          %688 = vst [vmem:[%s596 + $0x90] sm:$0xf] %v687
          %689 = vst.msk [vmem:[%s596 + $0x94] sm:$0xf] %vm185, %v495
          %v690 = vld [vmem:[%s596 + $0x98] sm:$0x1]
          %v691 = vsel %vm605, %v496, %v690
          %692 = vst [vmem:[%s596 + $0x98] sm:$0x1] %v691
          %v693 = vld [vmem:[%s596 + $0x9c] sm:$0xf]
          %v694 = vsel %vm599, %v503, %v693
          %695 = vst [vmem:[%s596 + $0x9c] sm:$0xf] %v694
          %696 = vst.msk [vmem:[%s596 + $0xa0] sm:$0xf] %vm185, %v512
          %v697 = vld [vmem:[%s596 + $0xa4] sm:$0x1]
          %v698 = vsel %vm605, %v513, %v697
          %699 = vst [vmem:[%s596 + $0xa4] sm:$0x1] %v698
          %v700 = vld [vmem:[%s596 + $0xa8] sm:$0xf]
          %v701 = vsel %vm599, %v520, %v700
          %702 = vst [vmem:[%s596 + $0xa8] sm:$0xf] %v701
          %703 = vst.msk [vmem:[%s596 + $0xac] sm:$0xf] %vm185, %v529
          %v704 = vld [vmem:[%s596 + $0xb0] sm:$0x1]
          %v705 = vsel %vm605, %v530, %v704
          %706 = vst [vmem:[%s596 + $0xb0] sm:$0x1] %v705
          %v707 = vld [vmem:[%s596 + $0xb4] sm:$0xf]
          %v708 = vsel %vm599, %v537, %v707
          %709 = vst [vmem:[%s596 + $0xb4] sm:$0xf] %v708
          %710 = vst.msk [vmem:[%s596 + $0xb8] sm:$0xf] %vm185, %v546
          %v711 = vld [vmem:[%s596 + $0xbc] sm:$0x1]
          %v712 = vsel %vm605, %v547, %v711
          %713 = vst [vmem:[%s596 + $0xbc] sm:$0x1] %v712
          %s714 = smul.u32 %s180, 3
          %s715 = smul.addr %s714, 4
          %s716 = scalar_lea.vmem [#allocation2], %s715
          %v717 = vld [vmem:[%s716] sm:$0xf]
          %v718 = vld [vmem:[%s716 + $0x4] sm:$0xf]
          %v719 = vld [vmem:[%s716 + $0xc] sm:$0xf]
          %v720 = vld [vmem:[%s716 + $0x10] sm:$0xf]
          %v721 = vld [vmem:[%s716 + $0x18] sm:$0xf]
          %v722 = vld [vmem:[%s716 + $0x1c] sm:$0xf]
          %v723 = vld [vmem:[%s716 + $0x24] sm:$0xf]
          %v724 = vld [vmem:[%s716 + $0x28] sm:$0xf]
          %v725 = vld [vmem:[%s716 + $0x30] sm:$0xf]
          %v726 = vld [vmem:[%s716 + $0x34] sm:$0xf]
          %v727 = vld [vmem:[%s716 + $0x3c] sm:$0xf]
          %v728 = vld [vmem:[%s716 + $0x40] sm:$0xf]
          %v729 = vld [vmem:[%s716 + $0x48] sm:$0xf]
          %v730 = vld [vmem:[%s716 + $0x4c] sm:$0xf]
          %v731 = vld [vmem:[%s716 + $0x54] sm:$0xf]
          %v732 = vld [vmem:[%s716 + $0x58] sm:$0xf]
          %v749 = vunpack.c.l.b16 %v717
          %v750 = vunpack.c.l.b16 %v718
          %v751 = vunpack.c.l.b16 %v719
          %v752 = vunpack.c.l.b16 %v720
          %v753 = vunpack.c.l.b16 %v721
          %v754 = vunpack.c.l.b16 %v722
          %v755 = vunpack.c.l.b16 %v723
          %v756 = vunpack.c.l.b16 %v724
          %v757 = vunpack.c.l.b16 %v725
          %v758 = vunpack.c.l.b16 %v726
          %v759 = vunpack.c.l.b16 %v727
          %v760 = vunpack.c.l.b16 %v728
          %v761 = vunpack.c.l.b16 %v729
          %v762 = vunpack.c.l.b16 %v730
          %v763 = vunpack.c.l.b16 %v731
          %v764 = vunpack.c.l.b16 %v732
          %v765 = vpack.c.b16 %v750, %v749
          %v766 = vpack.c.b16 %v752, %v751
          %v767 = vpack.c.b16 %v754, %v753
          %v768 = vpack.c.b16 %v756, %v755
          %v769 = vpack.c.b16 %v758, %v757
          %v770 = vpack.c.b16 %v760, %v759
          %v771 = vpack.c.b16 %v762, %v761
          %v772 = vpack.c.b16 %v764, %v763
          %vm781 = vcmask 31744
          %782 = vst.msk [vmem:[#allocation3] sm:$0xff] %vm781, %v765
          %783 = vst.msk [vmem:[#allocation3 + $0x8] sm:$0xff] %vm781, %v766
          %784 = vst.msk [vmem:[#allocation3 + $0x10] sm:$0xff] %vm781, %v767
          %785 = vst.msk [vmem:[#allocation3 + $0x18] sm:$0xff] %vm781, %v768
          %786 = vst.msk [vmem:[#allocation3 + $0x20] sm:$0xff] %vm781, %v769
          %787 = vst.msk [vmem:[#allocation3 + $0x28] sm:$0xff] %vm781, %v770
          %788 = vst.msk [vmem:[#allocation3 + $0x30] sm:$0xff] %vm781, %v771
          %789 = vst.msk [vmem:[#allocation3 + $0x38] sm:$0xff] %vm781, %v772
          %v790 = vld [vmem:[%s716] sm:$0xf]
          %v791 = vld [vmem:[%s716 + $0x4] sm:$0xf]
          %v792 = vld [vmem:[%s716 + $0x8] sm:$0x1]
          %v793 = vld [vmem:[%s716 + $0xc] sm:$0xf]
          %v794 = vld [vmem:[%s716 + $0x10] sm:$0xf]
          %v795 = vld [vmem:[%s716 + $0x14] sm:$0x1]
          %v796 = vld [vmem:[%s716 + $0x18] sm:$0xf]
          %v797 = vld [vmem:[%s716 + $0x1c] sm:$0xf]
          %v798 = vld [vmem:[%s716 + $0x20] sm:$0x1]
          %v799 = vld [vmem:[%s716 + $0x24] sm:$0xf]
          %v800 = vld [vmem:[%s716 + $0x28] sm:$0xf]
          %v801 = vld [vmem:[%s716 + $0x2c] sm:$0x1]
          %v802 = vld [vmem:[%s716 + $0x30] sm:$0xf]
          %v803 = vld [vmem:[%s716 + $0x34] sm:$0xf]
          %v804 = vld [vmem:[%s716 + $0x38] sm:$0x1]
          %v805 = vld [vmem:[%s716 + $0x3c] sm:$0xf]
          %v806 = vld [vmem:[%s716 + $0x40] sm:$0xf]
          %v807 = vld [vmem:[%s716 + $0x44] sm:$0x1]
          %v808 = vld [vmem:[%s716 + $0x48] sm:$0xf]
          %v809 = vld [vmem:[%s716 + $0x4c] sm:$0xf]
          %v810 = vld [vmem:[%s716 + $0x50] sm:$0x1]
          %v811 = vld [vmem:[%s716 + $0x54] sm:$0xf]
          %v812 = vld [vmem:[%s716 + $0x58] sm:$0xf]
          %v813 = vld [vmem:[%s716 + $0x5c] sm:$0x1]
          %vm814 = vsmask.f32 3328
          %vm815 = vsmask.f32 7440
          %vm816 = vmor %vm814, %vm815
          %v818 = vshrl.u32 %v790, 16
          %v820 = vrot.slane %v818, 4
          %v821 = vshll.u32 %v790, 16
          %v823 = vrot.slane %v821, 5
          %v824 = vor.u32 %v820, %v823
          %v825 = vrot.slane %v824, 4
          %v827 = vshll.u32 %v791, 16
          %v829 = vrot.slane %v827, 5
          %v830 = vsel %vm816, %v825, %v829
          %v831 = vshrl.u32 %v791, 16
          %v833 = vrot.slane %v831, 4
          %v834 = vor.u32 %v833, %v829
          %v835 = vrot.slane %v834, 4
          %v837 = vshll.u32 %v792, 16
          %v839 = vrot.slane %v837, 5
          %v840 = vsel %vm816, %v835, %v839
          %v842 = vshrl.u32 %v793, 16
          %v844 = vrot.slane %v842, 4
          %v845 = vshll.u32 %v793, 16
          %v847 = vrot.slane %v845, 5
          %v848 = vor.u32 %v844, %v847
          %v849 = vrot.slane %v848, 4
          %v851 = vshll.u32 %v794, 16
          %v853 = vrot.slane %v851, 5
          %v854 = vsel %vm816, %v849, %v853
          %v855 = vshrl.u32 %v794, 16
          %v857 = vrot.slane %v855, 4
          %v858 = vor.u32 %v857, %v853
          %v859 = vrot.slane %v858, 4
          %v861 = vshll.u32 %v795, 16
          %v863 = vrot.slane %v861, 5
          %v864 = vsel %vm816, %v859, %v863
          %v866 = vshrl.u32 %v796, 16
          %v868 = vrot.slane %v866, 4
          %v869 = vshll.u32 %v796, 16
          %v871 = vrot.slane %v869, 5
          %v872 = vor.u32 %v868, %v871
          %v873 = vrot.slane %v872, 4
          %v875 = vshll.u32 %v797, 16
          %v877 = vrot.slane %v875, 5
          %v878 = vsel %vm816, %v873, %v877
          %v879 = vshrl.u32 %v797, 16
          %v881 = vrot.slane %v879, 4
          %v882 = vor.u32 %v881, %v877
          %v883 = vrot.slane %v882, 4
          %v885 = vshll.u32 %v798, 16
          %v887 = vrot.slane %v885, 5
          %v888 = vsel %vm816, %v883, %v887
          %v890 = vshrl.u32 %v799, 16
          %v892 = vrot.slane %v890, 4
          %v893 = vshll.u32 %v799, 16
          %v895 = vrot.slane %v893, 5
          %v896 = vor.u32 %v892, %v895
          %v897 = vrot.slane %v896, 4
          %v899 = vshll.u32 %v800, 16
          %v901 = vrot.slane %v899, 5
          %v902 = vsel %vm816, %v897, %v901
          %v903 = vshrl.u32 %v800, 16
          %v905 = vrot.slane %v903, 4
          %v906 = vor.u32 %v905, %v901
          %v907 = vrot.slane %v906, 4
          %v909 = vshll.u32 %v801, 16
          %v911 = vrot.slane %v909, 5
          %v912 = vsel %vm816, %v907, %v911
          %v914 = vshrl.u32 %v802, 16
          %v916 = vrot.slane %v914, 4
          %v917 = vshll.u32 %v802, 16
          %v919 = vrot.slane %v917, 5
          %v920 = vor.u32 %v916, %v919
          %v921 = vrot.slane %v920, 4
          %v923 = vshll.u32 %v803, 16
          %v925 = vrot.slane %v923, 5
          %v926 = vsel %vm816, %v921, %v925
          %v927 = vshrl.u32 %v803, 16
          %v929 = vrot.slane %v927, 4
          %v930 = vor.u32 %v929, %v925
          %v931 = vrot.slane %v930, 4
          %v933 = vshll.u32 %v804, 16
          %v935 = vrot.slane %v933, 5
          %v936 = vsel %vm816, %v931, %v935
          %v938 = vshrl.u32 %v805, 16
          %v940 = vrot.slane %v938, 4
          %v941 = vshll.u32 %v805, 16
          %v943 = vrot.slane %v941, 5
          %v944 = vor.u32 %v940, %v943
          %v945 = vrot.slane %v944, 4
          %v947 = vshll.u32 %v806, 16
          %v949 = vrot.slane %v947, 5
          %v950 = vsel %vm816, %v945, %v949
          %v951 = vshrl.u32 %v806, 16
          %v953 = vrot.slane %v951, 4
          %v954 = vor.u32 %v953, %v949
          %v955 = vrot.slane %v954, 4
          %v957 = vshll.u32 %v807, 16
          %v959 = vrot.slane %v957, 5
          %v960 = vsel %vm816, %v955, %v959
          %v962 = vshrl.u32 %v808, 16
          %v964 = vrot.slane %v962, 4
          %v965 = vshll.u32 %v808, 16
          %v967 = vrot.slane %v965, 5
          %v968 = vor.u32 %v964, %v967
          %v969 = vrot.slane %v968, 4
          %v971 = vshll.u32 %v809, 16
          %v973 = vrot.slane %v971, 5
          %v974 = vsel %vm816, %v969, %v973
          %v975 = vshrl.u32 %v809, 16
          %v977 = vrot.slane %v975, 4
          %v978 = vor.u32 %v977, %v973
          %v979 = vrot.slane %v978, 4
          %v981 = vshll.u32 %v810, 16
          %v983 = vrot.slane %v981, 5
          %v984 = vsel %vm816, %v979, %v983
          %v986 = vshrl.u32 %v811, 16
          %v988 = vrot.slane %v986, 4
          %v989 = vshll.u32 %v811, 16
          %v991 = vrot.slane %v989, 5
          %v992 = vor.u32 %v988, %v991
          %v993 = vrot.slane %v992, 4
          %v995 = vshll.u32 %v812, 16
          %v997 = vrot.slane %v995, 5
          %v998 = vsel %vm816, %v993, %v997
          %v999 = vshrl.u32 %v812, 16
          %v1001 = vrot.slane %v999, 4
          %v1002 = vor.u32 %v1001, %v997
          %v1003 = vrot.slane %v1002, 4
          %v1005 = vshll.u32 %v813, 16
          %v1007 = vrot.slane %v1005, 5
          %v1008 = vsel %vm816, %v1003, %v1007
          %v1009 = vunpack.c.l.b16 %v830
          %v1010 = vunpack.c.l.b16 %v840
          %v1011 = vunpack.c.l.b16 %v854
          %v1012 = vunpack.c.l.b16 %v864
          %v1013 = vunpack.c.l.b16 %v878
          %v1014 = vunpack.c.l.b16 %v888
          %v1015 = vunpack.c.l.b16 %v902
          %v1016 = vunpack.c.l.b16 %v912
          %v1017 = vunpack.c.l.b16 %v926
          %v1018 = vunpack.c.l.b16 %v936
          %v1019 = vunpack.c.l.b16 %v950
          %v1020 = vunpack.c.l.b16 %v960
          %v1021 = vunpack.c.l.b16 %v974
          %v1022 = vunpack.c.l.b16 %v984
          %v1023 = vunpack.c.l.b16 %v998
          %v1024 = vunpack.c.l.b16 %v1008
          %v1025 = vpack.c.b16 %v1010, %v1009
          %v1026 = vpack.c.b16 %v1012, %v1011
          %v1027 = vpack.c.b16 %v1014, %v1013
          %v1028 = vpack.c.b16 %v1016, %v1015
          %v1029 = vpack.c.b16 %v1018, %v1017
          %v1030 = vpack.c.b16 %v1020, %v1019
          %v1031 = vpack.c.b16 %v1022, %v1021
          %v1032 = vpack.c.b16 %v1024, %v1023
          %1033 = vrot.lane.b32.xlu0 %v1025, 4
          %v1034 = vpop.permute.xlu0 %1033
          %1035 = vrot.lane.b32.xlu0 %v1026, 4
          %v1036 = vpop.permute.xlu0 %1035
          %1037 = vrot.lane.b32.xlu0 %v1027, 4
          %v1038 = vpop.permute.xlu0 %1037
          %1039 = vrot.lane.b32.xlu0 %v1028, 4
          %v1040 = vpop.permute.xlu0 %1039
          %1041 = vrot.lane.b32.xlu0 %v1029, 4
          %v1042 = vpop.permute.xlu0 %1041
          %1043 = vrot.lane.b32.xlu0 %v1030, 4
          %v1044 = vpop.permute.xlu0 %1043
          %1045 = vrot.lane.b32.xlu0 %v1031, 4
          %v1046 = vpop.permute.xlu0 %1045
          %1047 = vrot.lane.b32.xlu0 %v1032, 4
          %v1048 = vpop.permute.xlu0 %1047
          %vm1057 = vcmask 64544
          %1058 = vst.msk [vmem:[#allocation3] sm:$0xff] %vm1057, %v1034
          %1059 = vst.msk [vmem:[#allocation3 + $0x8] sm:$0xff] %vm1057, %v1036
          %1060 = vst.msk [vmem:[#allocation3 + $0x10] sm:$0xff] %vm1057, %v1038
          %1061 = vst.msk [vmem:[#allocation3 + $0x18] sm:$0xff] %vm1057, %v1040
          %1062 = vst.msk [vmem:[#allocation3 + $0x20] sm:$0xff] %vm1057, %v1042
          %1063 = vst.msk [vmem:[#allocation3 + $0x28] sm:$0xff] %vm1057, %v1044
          %1064 = vst.msk [vmem:[#allocation3 + $0x30] sm:$0xff] %vm1057, %v1046
          %1065 = vst.msk [vmem:[#allocation3 + $0x38] sm:$0xff] %vm1057, %v1048
          %v1066 = vld [vmem:[%s716] sm:$0xe]
          %v1067 = vld [vmem:[%s716 + $0x4] sm:$0xf]
          %v1068 = vld [vmem:[%s716 + $0x8] sm:$0x1]
          %v1069 = vld [vmem:[%s716 + $0xc] sm:$0xe]
          %v1070 = vld [vmem:[%s716 + $0x10] sm:$0xf]
          %v1071 = vld [vmem:[%s716 + $0x14] sm:$0x1]
          %v1072 = vld [vmem:[%s716 + $0x18] sm:$0xe]
          %v1073 = vld [vmem:[%s716 + $0x1c] sm:$0xf]
          %v1074 = vld [vmem:[%s716 + $0x20] sm:$0x1]
          %v1075 = vld [vmem:[%s716 + $0x24] sm:$0xe]
          %v1076 = vld [vmem:[%s716 + $0x28] sm:$0xf]
          %v1077 = vld [vmem:[%s716 + $0x2c] sm:$0x1]
          %v1078 = vld [vmem:[%s716 + $0x30] sm:$0xe]
          %v1079 = vld [vmem:[%s716 + $0x34] sm:$0xf]
          %v1080 = vld [vmem:[%s716 + $0x38] sm:$0x1]
          %v1081 = vld [vmem:[%s716 + $0x3c] sm:$0xe]
          %v1082 = vld [vmem:[%s716 + $0x40] sm:$0xf]
          %v1083 = vld [vmem:[%s716 + $0x44] sm:$0x1]
          %v1084 = vld [vmem:[%s716 + $0x48] sm:$0xe]
          %v1085 = vld [vmem:[%s716 + $0x4c] sm:$0xf]
          %v1086 = vld [vmem:[%s716 + $0x50] sm:$0x1]
          %v1087 = vld [vmem:[%s716 + $0x54] sm:$0xe]
          %v1088 = vld [vmem:[%s716 + $0x58] sm:$0xf]
          %v1089 = vld [vmem:[%s716 + $0x5c] sm:$0x1]
          %vm1114 = vcmask 1042432
          %vm1115 = vcmask 1046532
          %vm1116 = vmor %vm1114, %vm1115
          %v1117 = vrot.slane %v1066, 5
          %v1118 = vrot.slane %v1117, 4
          %v1119 = vrot.slane %v1067, 5
          %v1120 = vsel %vm1116, %v1118, %v1119
          %v1121 = vrot.slane %v1119, 4
          %v1122 = vrot.slane %v1068, 5
          %v1123 = vsel %vm1116, %v1121, %v1122
          %v1124 = vrot.slane %v1069, 5
          %v1125 = vrot.slane %v1124, 4
          %v1126 = vrot.slane %v1070, 5
          %v1127 = vsel %vm1116, %v1125, %v1126
          %v1128 = vrot.slane %v1126, 4
          %v1129 = vrot.slane %v1071, 5
          %v1130 = vsel %vm1116, %v1128, %v1129
          %v1131 = vrot.slane %v1072, 5
          %v1132 = vrot.slane %v1131, 4
          %v1133 = vrot.slane %v1073, 5
          %v1134 = vsel %vm1116, %v1132, %v1133
          %v1135 = vrot.slane %v1133, 4
          %v1136 = vrot.slane %v1074, 5
          %v1137 = vsel %vm1116, %v1135, %v1136
          %v1138 = vrot.slane %v1075, 5
          %v1139 = vrot.slane %v1138, 4
          %v1140 = vrot.slane %v1076, 5
          %v1141 = vsel %vm1116, %v1139, %v1140
          %v1142 = vrot.slane %v1140, 4
          %v1143 = vrot.slane %v1077, 5
          %v1144 = vsel %vm1116, %v1142, %v1143
          %v1145 = vrot.slane %v1078, 5
          %v1146 = vrot.slane %v1145, 4
          %v1147 = vrot.slane %v1079, 5
          %v1148 = vsel %vm1116, %v1146, %v1147
          %v1149 = vrot.slane %v1147, 4
          %v1150 = vrot.slane %v1080, 5
          %v1151 = vsel %vm1116, %v1149, %v1150
          %v1152 = vrot.slane %v1081, 5
          %v1153 = vrot.slane %v1152, 4
          %v1154 = vrot.slane %v1082, 5
          %v1155 = vsel %vm1116, %v1153, %v1154
          %v1156 = vrot.slane %v1154, 4
          %v1157 = vrot.slane %v1083, 5
          %v1158 = vsel %vm1116, %v1156, %v1157
          %v1159 = vrot.slane %v1084, 5
          %v1160 = vrot.slane %v1159, 4
          %v1161 = vrot.slane %v1085, 5
          %v1162 = vsel %vm1116, %v1160, %v1161
          %v1163 = vrot.slane %v1161, 4
          %v1164 = vrot.slane %v1086, 5
          %v1165 = vsel %vm1116, %v1163, %v1164
          %v1166 = vrot.slane %v1087, 5
          %v1167 = vrot.slane %v1166, 4
          %v1168 = vrot.slane %v1088, 5
          %v1169 = vsel %vm1116, %v1167, %v1168
          %v1170 = vrot.slane %v1168, 4
          %v1171 = vrot.slane %v1089, 5
          %v1172 = vsel %vm1116, %v1170, %v1171
          %v1173 = vunpack.c.l.b16 %v1120
          %v1174 = vunpack.c.l.b16 %v1123
          %v1175 = vunpack.c.l.b16 %v1127
          %v1176 = vunpack.c.l.b16 %v1130
          %v1177 = vunpack.c.l.b16 %v1134
          %v1178 = vunpack.c.l.b16 %v1137
          %v1179 = vunpack.c.l.b16 %v1141
          %v1180 = vunpack.c.l.b16 %v1144
          %v1181 = vunpack.c.l.b16 %v1148
          %v1182 = vunpack.c.l.b16 %v1151
          %v1183 = vunpack.c.l.b16 %v1155
          %v1184 = vunpack.c.l.b16 %v1158
          %v1185 = vunpack.c.l.b16 %v1162
          %v1186 = vunpack.c.l.b16 %v1165
          %v1187 = vunpack.c.l.b16 %v1169
          %v1188 = vunpack.c.l.b16 %v1172
          %v1189 = vpack.c.b16 %v1174, %v1173
          %v1190 = vpack.c.b16 %v1176, %v1175
          %v1191 = vpack.c.b16 %v1178, %v1177
          %v1192 = vpack.c.b16 %v1180, %v1179
          %v1193 = vpack.c.b16 %v1182, %v1181
          %v1194 = vpack.c.b16 %v1184, %v1183
          %v1195 = vpack.c.b16 %v1186, %v1185
          %v1196 = vpack.c.b16 %v1188, %v1187
          %1197 = vrot.lane.b32.xlu0 %v1189, 8
          %v1198 = vpop.permute.xlu0 %1197
          %1199 = vrot.lane.b32.xlu0 %v1190, 8
          %v1200 = vpop.permute.xlu0 %1199
          %1201 = vrot.lane.b32.xlu0 %v1191, 8
          %v1202 = vpop.permute.xlu0 %1201
          %1203 = vrot.lane.b32.xlu0 %v1192, 8
          %v1204 = vpop.permute.xlu0 %1203
          %1205 = vrot.lane.b32.xlu0 %v1193, 8
          %v1206 = vpop.permute.xlu0 %1205
          %1207 = vrot.lane.b32.xlu0 %v1194, 8
          %v1208 = vpop.permute.xlu0 %1207
          %1209 = vrot.lane.b32.xlu0 %v1195, 8
          %v1210 = vpop.permute.xlu0 %1209
          %1211 = vrot.lane.b32.xlu0 %v1196, 8
          %v1212 = vpop.permute.xlu0 %1211
          %vm1221 = vcmask 97344
          %1222 = vst.msk [vmem:[#allocation3] sm:$0xff] %vm1221, %v1198
          %1223 = vst.msk [vmem:[#allocation3 + $0x8] sm:$0xff] %vm1221, %v1200
          %1224 = vst.msk [vmem:[#allocation3 + $0x10] sm:$0xff] %vm1221, %v1202
          %1225 = vst.msk [vmem:[#allocation3 + $0x18] sm:$0xff] %vm1221, %v1204
          %1226 = vst.msk [vmem:[#allocation3 + $0x20] sm:$0xff] %vm1221, %v1206
          %1227 = vst.msk [vmem:[#allocation3 + $0x28] sm:$0xff] %vm1221, %v1208
          %1228 = vst.msk [vmem:[#allocation3 + $0x30] sm:$0xff] %vm1221, %v1210
          %1229 = vst.msk [vmem:[#allocation3 + $0x38] sm:$0xff] %vm1221, %v1212
          %s1230 = sadd.s32 %s180, 1
          %s1231 = smul.u32 %s1230, 3
          %s1232 = smul.addr %s1231, 4
          %s1233 = scalar_lea.vmem [#allocation2], %s1232
          %v1234 = vld [vmem:[%s1233] sm:$0xf]
          %v1235 = vld [vmem:[%s1233 + $0x4] sm:$0xf]
          %v1236 = vld [vmem:[%s1233 + $0xc] sm:$0xf]
          %v1237 = vld [vmem:[%s1233 + $0x10] sm:$0xf]
          %v1238 = vld [vmem:[%s1233 + $0x18] sm:$0xf]
          %v1239 = vld [vmem:[%s1233 + $0x1c] sm:$0xf]
          %v1240 = vld [vmem:[%s1233 + $0x24] sm:$0xf]
          %v1241 = vld [vmem:[%s1233 + $0x28] sm:$0xf]
          %v1242 = vld [vmem:[%s1233 + $0x30] sm:$0xf]
          %v1243 = vld [vmem:[%s1233 + $0x34] sm:$0xf]
          %v1244 = vld [vmem:[%s1233 + $0x3c] sm:$0xf]
          %v1245 = vld [vmem:[%s1233 + $0x40] sm:$0xf]
          %v1246 = vld [vmem:[%s1233 + $0x48] sm:$0xf]
          %v1247 = vld [vmem:[%s1233 + $0x4c] sm:$0xf]
          %v1248 = vld [vmem:[%s1233 + $0x54] sm:$0xf]
          %v1249 = vld [vmem:[%s1233 + $0x58] sm:$0xf]
          %v1266 = vunpack.c.l.b16 %v1234
          %v1267 = vunpack.c.l.b16 %v1235
          %v1268 = vunpack.c.l.b16 %v1236
          %v1269 = vunpack.c.l.b16 %v1237
          %v1270 = vunpack.c.l.b16 %v1238
          %v1271 = vunpack.c.l.b16 %v1239
          %v1272 = vunpack.c.l.b16 %v1240
          %v1273 = vunpack.c.l.b16 %v1241
          %v1274 = vunpack.c.l.b16 %v1242
          %v1275 = vunpack.c.l.b16 %v1243
          %v1276 = vunpack.c.l.b16 %v1244
          %v1277 = vunpack.c.l.b16 %v1245
          %v1278 = vunpack.c.l.b16 %v1246
          %v1279 = vunpack.c.l.b16 %v1247
          %v1280 = vunpack.c.l.b16 %v1248
          %v1281 = vunpack.c.l.b16 %v1249
          %v1282 = vpack.c.b16 %v1267, %v1266
          %v1283 = vpack.c.b16 %v1269, %v1268
          %v1284 = vpack.c.b16 %v1271, %v1270
          %v1285 = vpack.c.b16 %v1273, %v1272
          %v1286 = vpack.c.b16 %v1275, %v1274
          %v1287 = vpack.c.b16 %v1277, %v1276
          %v1288 = vpack.c.b16 %v1279, %v1278
          %v1289 = vpack.c.b16 %v1281, %v1280
          %1290 = vrot.lane.b32.xlu0 %v1282, 12
          %v1291 = vpop.permute.xlu0 %1290
          %1292 = vrot.lane.b32.xlu0 %v1283, 12
          %v1293 = vpop.permute.xlu0 %1292
          %1294 = vrot.lane.b32.xlu0 %v1284, 12
          %v1295 = vpop.permute.xlu0 %1294
          %1296 = vrot.lane.b32.xlu0 %v1285, 12
          %v1297 = vpop.permute.xlu0 %1296
          %1298 = vrot.lane.b32.xlu0 %v1286, 12
          %v1299 = vpop.permute.xlu0 %1298
          %1300 = vrot.lane.b32.xlu0 %v1287, 12
          %v1301 = vpop.permute.xlu0 %1300
          %1302 = vrot.lane.b32.xlu0 %v1288, 12
          %v1303 = vpop.permute.xlu0 %1302
          %1304 = vrot.lane.b32.xlu0 %v1289, 12
          %v1305 = vpop.permute.xlu0 %1304
          %vm1314 = vcmask 130144
          %1315 = vst.msk [vmem:[#allocation3] sm:$0xff] %vm1314, %v1291
          %1316 = vst.msk [vmem:[#allocation3 + $0x8] sm:$0xff] %vm1314, %v1293
          %1317 = vst.msk [vmem:[#allocation3 + $0x10] sm:$0xff] %vm1314, %v1295
          %1318 = vst.msk [vmem:[#allocation3 + $0x18] sm:$0xff] %vm1314, %v1297
          %1319 = vst.msk [vmem:[#allocation3 + $0x20] sm:$0xff] %vm1314, %v1299
          %1320 = vst.msk [vmem:[#allocation3 + $0x28] sm:$0xff] %vm1314, %v1301
          %1321 = vst.msk [vmem:[#allocation3 + $0x30] sm:$0xff] %vm1314, %v1303
          %1322 = vst.msk [vmem:[#allocation3 + $0x38] sm:$0xff] %vm1314, %v1305
          %v1323 = vld [vmem:[%s1233] sm:$0xf]
          %v1324 = vld [vmem:[%s1233 + $0x4] sm:$0xf]
          %v1325 = vld [vmem:[%s1233 + $0x8] sm:$0x1]
          %v1326 = vld [vmem:[%s1233 + $0xc] sm:$0xf]
          %v1327 = vld [vmem:[%s1233 + $0x10] sm:$0xf]
          %v1328 = vld [vmem:[%s1233 + $0x14] sm:$0x1]
          %v1329 = vld [vmem:[%s1233 + $0x18] sm:$0xf]
          %v1330 = vld [vmem:[%s1233 + $0x1c] sm:$0xf]
          %v1331 = vld [vmem:[%s1233 + $0x20] sm:$0x1]
          %v1332 = vld [vmem:[%s1233 + $0x24] sm:$0xf]
          %v1333 = vld [vmem:[%s1233 + $0x28] sm:$0xf]
          %v1334 = vld [vmem:[%s1233 + $0x2c] sm:$0x1]
          %v1335 = vld [vmem:[%s1233 + $0x30] sm:$0xf]
          %v1336 = vld [vmem:[%s1233 + $0x34] sm:$0xf]
          %v1337 = vld [vmem:[%s1233 + $0x38] sm:$0x1]
          %v1338 = vld [vmem:[%s1233 + $0x3c] sm:$0xf]
          %v1339 = vld [vmem:[%s1233 + $0x40] sm:$0xf]
          %v1340 = vld [vmem:[%s1233 + $0x44] sm:$0x1]
          %v1341 = vld [vmem:[%s1233 + $0x48] sm:$0xf]
          %v1342 = vld [vmem:[%s1233 + $0x4c] sm:$0xf]
          %v1343 = vld [vmem:[%s1233 + $0x50] sm:$0x1]
          %v1344 = vld [vmem:[%s1233 + $0x54] sm:$0xf]
          %v1345 = vld [vmem:[%s1233 + $0x58] sm:$0xf]
          %v1346 = vld [vmem:[%s1233 + $0x5c] sm:$0x1]
          %v1348 = vshrl.u32 %v1323, 16
          %v1350 = vrot.slane %v1348, 4
          %v1351 = vshll.u32 %v1323, 16
          %v1353 = vrot.slane %v1351, 5
          %v1354 = vor.u32 %v1350, %v1353
          %v1355 = vrot.slane %v1354, 4
          %v1357 = vshll.u32 %v1324, 16
          %v1359 = vrot.slane %v1357, 5
          %v1360 = vsel %vm816, %v1355, %v1359
          %v1361 = vshrl.u32 %v1324, 16
          %v1363 = vrot.slane %v1361, 4
          %v1364 = vor.u32 %v1363, %v1359
          %v1365 = vrot.slane %v1364, 4
          %v1367 = vshll.u32 %v1325, 16
          %v1369 = vrot.slane %v1367, 5
          %v1370 = vsel %vm816, %v1365, %v1369
          %v1372 = vshrl.u32 %v1326, 16
          %v1374 = vrot.slane %v1372, 4
          %v1375 = vshll.u32 %v1326, 16
          %v1377 = vrot.slane %v1375, 5
          %v1378 = vor.u32 %v1374, %v1377
          %v1379 = vrot.slane %v1378, 4
          %v1381 = vshll.u32 %v1327, 16
          %v1383 = vrot.slane %v1381, 5
          %v1384 = vsel %vm816, %v1379, %v1383
          %v1385 = vshrl.u32 %v1327, 16
          %v1387 = vrot.slane %v1385, 4
          %v1388 = vor.u32 %v1387, %v1383
          %v1389 = vrot.slane %v1388, 4
          %v1391 = vshll.u32 %v1328, 16
          %v1393 = vrot.slane %v1391, 5
          %v1394 = vsel %vm816, %v1389, %v1393
          %v1396 = vshrl.u32 %v1329, 16
          %v1398 = vrot.slane %v1396, 4
          %v1399 = vshll.u32 %v1329, 16
          %v1401 = vrot.slane %v1399, 5
          %v1402 = vor.u32 %v1398, %v1401
          %v1403 = vrot.slane %v1402, 4
          %v1405 = vshll.u32 %v1330, 16
          %v1407 = vrot.slane %v1405, 5
          %v1408 = vsel %vm816, %v1403, %v1407
          %v1409 = vshrl.u32 %v1330, 16
          %v1411 = vrot.slane %v1409, 4
          %v1412 = vor.u32 %v1411, %v1407
          %v1413 = vrot.slane %v1412, 4
          %v1415 = vshll.u32 %v1331, 16
          %v1417 = vrot.slane %v1415, 5
          %v1418 = vsel %vm816, %v1413, %v1417
          %v1420 = vshrl.u32 %v1332, 16
          %v1422 = vrot.slane %v1420, 4
          %v1423 = vshll.u32 %v1332, 16
          %v1425 = vrot.slane %v1423, 5
          %v1426 = vor.u32 %v1422, %v1425
          %v1427 = vrot.slane %v1426, 4
          %v1429 = vshll.u32 %v1333, 16
          %v1431 = vrot.slane %v1429, 5
          %v1432 = vsel %vm816, %v1427, %v1431
          %v1433 = vshrl.u32 %v1333, 16
          %v1435 = vrot.slane %v1433, 4
          %v1436 = vor.u32 %v1435, %v1431
          %v1437 = vrot.slane %v1436, 4
          %v1439 = vshll.u32 %v1334, 16
          %v1441 = vrot.slane %v1439, 5
          %v1442 = vsel %vm816, %v1437, %v1441
          %v1444 = vshrl.u32 %v1335, 16
          %v1446 = vrot.slane %v1444, 4
          %v1447 = vshll.u32 %v1335, 16
          %v1449 = vrot.slane %v1447, 5
          %v1450 = vor.u32 %v1446, %v1449
          %v1451 = vrot.slane %v1450, 4
          %v1453 = vshll.u32 %v1336, 16
          %v1455 = vrot.slane %v1453, 5
          %v1456 = vsel %vm816, %v1451, %v1455
          %v1457 = vshrl.u32 %v1336, 16
          %v1459 = vrot.slane %v1457, 4
          %v1460 = vor.u32 %v1459, %v1455
          %v1461 = vrot.slane %v1460, 4
          %v1463 = vshll.u32 %v1337, 16
          %v1465 = vrot.slane %v1463, 5
          %v1466 = vsel %vm816, %v1461, %v1465
          %v1468 = vshrl.u32 %v1338, 16
          %v1470 = vrot.slane %v1468, 4
          %v1471 = vshll.u32 %v1338, 16
          %v1473 = vrot.slane %v1471, 5
          %v1474 = vor.u32 %v1470, %v1473
          %v1475 = vrot.slane %v1474, 4
          %v1477 = vshll.u32 %v1339, 16
          %v1479 = vrot.slane %v1477, 5
          %v1480 = vsel %vm816, %v1475, %v1479
          %v1481 = vshrl.u32 %v1339, 16
          %v1483 = vrot.slane %v1481, 4
          %v1484 = vor.u32 %v1483, %v1479
          %v1485 = vrot.slane %v1484, 4
          %v1487 = vshll.u32 %v1340, 16
          %v1489 = vrot.slane %v1487, 5
          %v1490 = vsel %vm816, %v1485, %v1489
          %v1492 = vshrl.u32 %v1341, 16
          %v1494 = vrot.slane %v1492, 4
          %v1495 = vshll.u32 %v1341, 16
          %v1497 = vrot.slane %v1495, 5
          %v1498 = vor.u32 %v1494, %v1497
          %v1499 = vrot.slane %v1498, 4
          %v1501 = vshll.u32 %v1342, 16
          %v1503 = vrot.slane %v1501, 5
          %v1504 = vsel %vm816, %v1499, %v1503
          %v1505 = vshrl.u32 %v1342, 16
          %v1507 = vrot.slane %v1505, 4
          %v1508 = vor.u32 %v1507, %v1503
          %v1509 = vrot.slane %v1508, 4
          %v1511 = vshll.u32 %v1343, 16
          %v1513 = vrot.slane %v1511, 5
          %v1514 = vsel %vm816, %v1509, %v1513
          %v1516 = vshrl.u32 %v1344, 16
          %v1518 = vrot.slane %v1516, 4
          %v1519 = vshll.u32 %v1344, 16
          %v1521 = vrot.slane %v1519, 5
          %v1522 = vor.u32 %v1518, %v1521
          %v1523 = vrot.slane %v1522, 4
          %v1525 = vshll.u32 %v1345, 16
          %v1527 = vrot.slane %v1525, 5
          %v1528 = vsel %vm816, %v1523, %v1527
          %v1529 = vshrl.u32 %v1345, 16
          %v1531 = vrot.slane %v1529, 4
          %v1532 = vor.u32 %v1531, %v1527
          %v1533 = vrot.slane %v1532, 4
          %v1535 = vshll.u32 %v1346, 16
          %v1537 = vrot.slane %v1535, 5
          %v1538 = vsel %vm816, %v1533, %v1537
          %v1539 = vunpack.c.l.b16 %v1360
          %v1540 = vunpack.c.l.b16 %v1370
          %v1541 = vunpack.c.l.b16 %v1384
          %v1542 = vunpack.c.l.b16 %v1394
          %v1543 = vunpack.c.l.b16 %v1408
          %v1544 = vunpack.c.l.b16 %v1418
          %v1545 = vunpack.c.l.b16 %v1432
          %v1546 = vunpack.c.l.b16 %v1442
          %v1547 = vunpack.c.l.b16 %v1456
          %v1548 = vunpack.c.l.b16 %v1466
          %v1549 = vunpack.c.l.b16 %v1480
          %v1550 = vunpack.c.l.b16 %v1490
          %v1551 = vunpack.c.l.b16 %v1504
          %v1552 = vunpack.c.l.b16 %v1514
          %v1553 = vunpack.c.l.b16 %v1528
          %v1554 = vunpack.c.l.b16 %v1538
          %v1555 = vpack.c.b16 %v1540, %v1539
          %v1556 = vpack.c.b16 %v1542, %v1541
          %v1557 = vpack.c.b16 %v1544, %v1543
          %v1558 = vpack.c.b16 %v1546, %v1545
          %v1559 = vpack.c.b16 %v1548, %v1547
          %v1560 = vpack.c.b16 %v1550, %v1549
          %v1561 = vpack.c.b16 %v1552, %v1551
          %v1562 = vpack.c.b16 %v1554, %v1553
          %1563 = vrot.lane.b32.xlu0 %v1555, 16
          %v1564 = vpop.permute.xlu0 %1563
          %1565 = vrot.lane.b32.xlu0 %v1556, 16
          %v1566 = vpop.permute.xlu0 %1565
          %1567 = vrot.lane.b32.xlu0 %v1557, 16
          %v1568 = vpop.permute.xlu0 %1567
          %1569 = vrot.lane.b32.xlu0 %v1558, 16
          %v1570 = vpop.permute.xlu0 %1569
          %1571 = vrot.lane.b32.xlu0 %v1559, 16
          %v1572 = vpop.permute.xlu0 %1571
          %1573 = vrot.lane.b32.xlu0 %v1560, 16
          %v1574 = vpop.permute.xlu0 %1573
          %1575 = vrot.lane.b32.xlu0 %v1561, 16
          %v1576 = vpop.permute.xlu0 %1575
          %1577 = vrot.lane.b32.xlu0 %v1562, 16
          %v1578 = vpop.permute.xlu0 %1577
          %vm1587 = vcmask 162944
          %1588 = vst.msk [vmem:[#allocation3] sm:$0xff] %vm1587, %v1564
          %1589 = vst.msk [vmem:[#allocation3 + $0x8] sm:$0xff] %vm1587, %v1566
          %1590 = vst.msk [vmem:[#allocation3 + $0x10] sm:$0xff] %vm1587, %v1568
          %1591 = vst.msk [vmem:[#allocation3 + $0x18] sm:$0xff] %vm1587, %v1570
          %1592 = vst.msk [vmem:[#allocation3 + $0x20] sm:$0xff] %vm1587, %v1572
          %1593 = vst.msk [vmem:[#allocation3 + $0x28] sm:$0xff] %vm1587, %v1574
          %1594 = vst.msk [vmem:[#allocation3 + $0x30] sm:$0xff] %vm1587, %v1576
          %1595 = vst.msk [vmem:[#allocation3 + $0x38] sm:$0xff] %vm1587, %v1578
          %v1596 = vld [vmem:[%s1233] sm:$0xe]
          %v1597 = vld [vmem:[%s1233 + $0x4] sm:$0xf]
          %v1598 = vld [vmem:[%s1233 + $0x8] sm:$0x1]
          %v1599 = vld [vmem:[%s1233 + $0xc] sm:$0xe]
          %v1600 = vld [vmem:[%s1233 + $0x10] sm:$0xf]
          %v1601 = vld [vmem:[%s1233 + $0x14] sm:$0x1]
          %v1602 = vld [vmem:[%s1233 + $0x18] sm:$0xe]
          %v1603 = vld [vmem:[%s1233 + $0x1c] sm:$0xf]
          %v1604 = vld [vmem:[%s1233 + $0x20] sm:$0x1]
          %v1605 = vld [vmem:[%s1233 + $0x24] sm:$0xe]
          %v1606 = vld [vmem:[%s1233 + $0x28] sm:$0xf]
          %v1607 = vld [vmem:[%s1233 + $0x2c] sm:$0x1]
          %v1608 = vld [vmem:[%s1233 + $0x30] sm:$0xe]
          %v1609 = vld [vmem:[%s1233 + $0x34] sm:$0xf]
          %v1610 = vld [vmem:[%s1233 + $0x38] sm:$0x1]
          %v1611 = vld [vmem:[%s1233 + $0x3c] sm:$0xe]
          %v1612 = vld [vmem:[%s1233 + $0x40] sm:$0xf]
          %v1613 = vld [vmem:[%s1233 + $0x44] sm:$0x1]
          %v1614 = vld [vmem:[%s1233 + $0x48] sm:$0xe]
          %v1615 = vld [vmem:[%s1233 + $0x4c] sm:$0xf]
          %v1616 = vld [vmem:[%s1233 + $0x50] sm:$0x1]
          %v1617 = vld [vmem:[%s1233 + $0x54] sm:$0xe]
          %v1618 = vld [vmem:[%s1233 + $0x58] sm:$0xf]
          %v1619 = vld [vmem:[%s1233 + $0x5c] sm:$0x1]
          %v1644 = vrot.slane %v1596, 5
          %v1645 = vrot.slane %v1644, 4
          %v1646 = vrot.slane %v1597, 5
          %v1647 = vsel %vm1116, %v1645, %v1646
          %v1648 = vrot.slane %v1646, 4
          %v1649 = vrot.slane %v1598, 5
          %v1650 = vsel %vm1116, %v1648, %v1649
          %v1651 = vrot.slane %v1599, 5
          %v1652 = vrot.slane %v1651, 4
          %v1653 = vrot.slane %v1600, 5
          %v1654 = vsel %vm1116, %v1652, %v1653
          %v1655 = vrot.slane %v1653, 4
          %v1656 = vrot.slane %v1601, 5
          %v1657 = vsel %vm1116, %v1655, %v1656
          %v1658 = vrot.slane %v1602, 5
          %v1659 = vrot.slane %v1658, 4
          %v1660 = vrot.slane %v1603, 5
          %v1661 = vsel %vm1116, %v1659, %v1660
          %v1662 = vrot.slane %v1660, 4
          %v1663 = vrot.slane %v1604, 5
          %v1664 = vsel %vm1116, %v1662, %v1663
          %v1665 = vrot.slane %v1605, 5
          %v1666 = vrot.slane %v1665, 4
          %v1667 = vrot.slane %v1606, 5
          %v1668 = vsel %vm1116, %v1666, %v1667
          %v1669 = vrot.slane %v1667, 4
          %v1670 = vrot.slane %v1607, 5
          %v1671 = vsel %vm1116, %v1669, %v1670
          %v1672 = vrot.slane %v1608, 5
          %v1673 = vrot.slane %v1672, 4
          %v1674 = vrot.slane %v1609, 5
          %v1675 = vsel %vm1116, %v1673, %v1674
          %v1676 = vrot.slane %v1674, 4
          %v1677 = vrot.slane %v1610, 5
          %v1678 = vsel %vm1116, %v1676, %v1677
          %v1679 = vrot.slane %v1611, 5
          %v1680 = vrot.slane %v1679, 4
          %v1681 = vrot.slane %v1612, 5
          %v1682 = vsel %vm1116, %v1680, %v1681
          %v1683 = vrot.slane %v1681, 4
          %v1684 = vrot.slane %v1613, 5
          %v1685 = vsel %vm1116, %v1683, %v1684
          %v1686 = vrot.slane %v1614, 5
          %v1687 = vrot.slane %v1686, 4
          %v1688 = vrot.slane %v1615, 5
          %v1689 = vsel %vm1116, %v1687, %v1688
          %v1690 = vrot.slane %v1688, 4
          %v1691 = vrot.slane %v1616, 5
          %v1692 = vsel %vm1116, %v1690, %v1691
          %v1693 = vrot.slane %v1617, 5
          %v1694 = vrot.slane %v1693, 4
          %v1695 = vrot.slane %v1618, 5
          %v1696 = vsel %vm1116, %v1694, %v1695
          %v1697 = vrot.slane %v1695, 4
          %v1698 = vrot.slane %v1619, 5
          %v1699 = vsel %vm1116, %v1697, %v1698
          %v1700 = vunpack.c.l.b16 %v1647
          %v1701 = vunpack.c.l.b16 %v1650
          %v1702 = vunpack.c.l.b16 %v1654
          %v1703 = vunpack.c.l.b16 %v1657
          %v1704 = vunpack.c.l.b16 %v1661
          %v1705 = vunpack.c.l.b16 %v1664
          %v1706 = vunpack.c.l.b16 %v1668
          %v1707 = vunpack.c.l.b16 %v1671
          %v1708 = vunpack.c.l.b16 %v1675
          %v1709 = vunpack.c.l.b16 %v1678
          %v1710 = vunpack.c.l.b16 %v1682
          %v1711 = vunpack.c.l.b16 %v1685
          %v1712 = vunpack.c.l.b16 %v1689
          %v1713 = vunpack.c.l.b16 %v1692
          %v1714 = vunpack.c.l.b16 %v1696
          %v1715 = vunpack.c.l.b16 %v1699
          %v1716 = vpack.c.b16 %v1701, %v1700
          %v1717 = vpack.c.b16 %v1703, %v1702
          %v1718 = vpack.c.b16 %v1705, %v1704
          %v1719 = vpack.c.b16 %v1707, %v1706
          %v1720 = vpack.c.b16 %v1709, %v1708
          %v1721 = vpack.c.b16 %v1711, %v1710
          %v1722 = vpack.c.b16 %v1713, %v1712
          %v1723 = vpack.c.b16 %v1715, %v1714
          %1724 = vrot.lane.b32.xlu0 %v1716, 20
          %v1725 = vpop.permute.xlu0 %1724
          %1726 = vrot.lane.b32.xlu0 %v1717, 20
          %v1727 = vpop.permute.xlu0 %1726
          %1728 = vrot.lane.b32.xlu0 %v1718, 20
          %v1729 = vpop.permute.xlu0 %1728
          %1730 = vrot.lane.b32.xlu0 %v1719, 20
          %v1731 = vpop.permute.xlu0 %1730
          %1732 = vrot.lane.b32.xlu0 %v1720, 20
          %v1733 = vpop.permute.xlu0 %1732
          %1734 = vrot.lane.b32.xlu0 %v1721, 20
          %v1735 = vpop.permute.xlu0 %1734
          %1736 = vrot.lane.b32.xlu0 %v1722, 20
          %v1737 = vpop.permute.xlu0 %1736
          %1738 = vrot.lane.b32.xlu0 %v1723, 20
          %v1739 = vpop.permute.xlu0 %1738
          %vm1748 = vcmask 195744
          %1749 = vst.msk [vmem:[#allocation3] sm:$0xff] %vm1748, %v1725
          %1750 = vst.msk [vmem:[#allocation3 + $0x8] sm:$0xff] %vm1748, %v1727
          %1751 = vst.msk [vmem:[#allocation3 + $0x10] sm:$0xff] %vm1748, %v1729
          %1752 = vst.msk [vmem:[#allocation3 + $0x18] sm:$0xff] %vm1748, %v1731
          %1753 = vst.msk [vmem:[#allocation3 + $0x20] sm:$0xff] %vm1748, %v1733
          %1754 = vst.msk [vmem:[#allocation3 + $0x28] sm:$0xff] %vm1748, %v1735
          %1755 = vst.msk [vmem:[#allocation3 + $0x30] sm:$0xff] %vm1748, %v1737
          %1756 = vst.msk [vmem:[#allocation3 + $0x38] sm:$0xff] %vm1748, %v1739
          %s1757 = sadd.s32 %s180, 2
          %s1758 = smul.u32 %s1757, 3
          %s1759 = smul.addr %s1758, 4
          %s1760 = scalar_lea.vmem [#allocation2], %s1759
          %v1761 = vld [vmem:[%s1760] sm:$0xf]
          %v1762 = vld [vmem:[%s1760 + $0x4] sm:$0xf]
          %v1763 = vld [vmem:[%s1760 + $0xc] sm:$0xf]
          %v1764 = vld [vmem:[%s1760 + $0x10] sm:$0xf]
          %v1765 = vld [vmem:[%s1760 + $0x18] sm:$0xf]
          %v1766 = vld [vmem:[%s1760 + $0x1c] sm:$0xf]
          %v1767 = vld [vmem:[%s1760 + $0x24] sm:$0xf]
          %v1768 = vld [vmem:[%s1760 + $0x28] sm:$0xf]
          %v1769 = vld [vmem:[%s1760 + $0x30] sm:$0xf]
          %v1770 = vld [vmem:[%s1760 + $0x34] sm:$0xf]
          %v1771 = vld [vmem:[%s1760 + $0x3c] sm:$0xf]
          %v1772 = vld [vmem:[%s1760 + $0x40] sm:$0xf]
          %v1773 = vld [vmem:[%s1760 + $0x48] sm:$0xf]
          %v1774 = vld [vmem:[%s1760 + $0x4c] sm:$0xf]
          %v1775 = vld [vmem:[%s1760 + $0x54] sm:$0xf]
          %v1776 = vld [vmem:[%s1760 + $0x58] sm:$0xf]
          %v1793 = vunpack.c.l.b16 %v1761
          %v1794 = vunpack.c.l.b16 %v1762
          %v1795 = vunpack.c.l.b16 %v1763
          %v1796 = vunpack.c.l.b16 %v1764
          %v1797 = vunpack.c.l.b16 %v1765
          %v1798 = vunpack.c.l.b16 %v1766
          %v1799 = vunpack.c.l.b16 %v1767
          %v1800 = vunpack.c.l.b16 %v1768
          %v1801 = vunpack.c.l.b16 %v1769
          %v1802 = vunpack.c.l.b16 %v1770
          %v1803 = vunpack.c.l.b16 %v1771
          %v1804 = vunpack.c.l.b16 %v1772
          %v1805 = vunpack.c.l.b16 %v1773
          %v1806 = vunpack.c.l.b16 %v1774
          %v1807 = vunpack.c.l.b16 %v1775
          %v1808 = vunpack.c.l.b16 %v1776
          %v1809 = vpack.c.b16 %v1794, %v1793
          %v1810 = vpack.c.b16 %v1796, %v1795
          %v1811 = vpack.c.b16 %v1798, %v1797
          %v1812 = vpack.c.b16 %v1800, %v1799
          %v1813 = vpack.c.b16 %v1802, %v1801
          %v1814 = vpack.c.b16 %v1804, %v1803
          %v1815 = vpack.c.b16 %v1806, %v1805
          %v1816 = vpack.c.b16 %v1808, %v1807
          %1817 = vrot.lane.b32.xlu0 %v1809, 24
          %v1818 = vpop.permute.xlu0 %1817
          %1819 = vrot.lane.b32.xlu0 %v1810, 24
          %v1820 = vpop.permute.xlu0 %1819
          %1821 = vrot.lane.b32.xlu0 %v1811, 24
          %v1822 = vpop.permute.xlu0 %1821
          %1823 = vrot.lane.b32.xlu0 %v1812, 24
          %v1824 = vpop.permute.xlu0 %1823
          %1825 = vrot.lane.b32.xlu0 %v1813, 24
          %v1826 = vpop.permute.xlu0 %1825
          %1827 = vrot.lane.b32.xlu0 %v1814, 24
          %v1828 = vpop.permute.xlu0 %1827
          %1829 = vrot.lane.b32.xlu0 %v1815, 24
          %v1830 = vpop.permute.xlu0 %1829
          %1831 = vrot.lane.b32.xlu0 %v1816, 24
          %v1832 = vpop.permute.xlu0 %1831
          %vm1841 = vcmask 228544
          %1842 = vst.msk [vmem:[#allocation3] sm:$0xff] %vm1841, %v1818
          %1843 = vst.msk [vmem:[#allocation3 + $0x8] sm:$0xff] %vm1841, %v1820
          %1844 = vst.msk [vmem:[#allocation3 + $0x10] sm:$0xff] %vm1841, %v1822
          %1845 = vst.msk [vmem:[#allocation3 + $0x18] sm:$0xff] %vm1841, %v1824
          %1846 = vst.msk [vmem:[#allocation3 + $0x20] sm:$0xff] %vm1841, %v1826
          %1847 = vst.msk [vmem:[#allocation3 + $0x28] sm:$0xff] %vm1841, %v1828
          %1848 = vst.msk [vmem:[#allocation3 + $0x30] sm:$0xff] %vm1841, %v1830
          %1849 = vst.msk [vmem:[#allocation3 + $0x38] sm:$0xff] %vm1841, %v1832
          %v1850 = vld [vmem:[%s1760] sm:$0xf]
          %v1851 = vld [vmem:[%s1760 + $0x4] sm:$0xf]
          %v1852 = vld [vmem:[%s1760 + $0x8] sm:$0x1]
          %v1853 = vld [vmem:[%s1760 + $0xc] sm:$0xf]
          %v1854 = vld [vmem:[%s1760 + $0x10] sm:$0xf]
          %v1855 = vld [vmem:[%s1760 + $0x14] sm:$0x1]
          %v1856 = vld [vmem:[%s1760 + $0x18] sm:$0xf]
          %v1857 = vld [vmem:[%s1760 + $0x1c] sm:$0xf]
          %v1858 = vld [vmem:[%s1760 + $0x20] sm:$0x1]
          %v1859 = vld [vmem:[%s1760 + $0x24] sm:$0xf]
          %v1860 = vld [vmem:[%s1760 + $0x28] sm:$0xf]
          %v1861 = vld [vmem:[%s1760 + $0x2c] sm:$0x1]
          %v1862 = vld [vmem:[%s1760 + $0x30] sm:$0xf]
          %v1863 = vld [vmem:[%s1760 + $0x34] sm:$0xf]
          %v1864 = vld [vmem:[%s1760 + $0x38] sm:$0x1]
          %v1865 = vld [vmem:[%s1760 + $0x3c] sm:$0xf]
          %v1866 = vld [vmem:[%s1760 + $0x40] sm:$0xf]
          %v1867 = vld [vmem:[%s1760 + $0x44] sm:$0x1]
          %v1868 = vld [vmem:[%s1760 + $0x48] sm:$0xf]
          %v1869 = vld [vmem:[%s1760 + $0x4c] sm:$0xf]
          %v1870 = vld [vmem:[%s1760 + $0x50] sm:$0x1]
          %v1871 = vld [vmem:[%s1760 + $0x54] sm:$0xf]
          %v1872 = vld [vmem:[%s1760 + $0x58] sm:$0xf]
          %v1873 = vld [vmem:[%s1760 + $0x5c] sm:$0x1]
          %v1875 = vshrl.u32 %v1850, 16
          %v1877 = vrot.slane %v1875, 4
          %v1878 = vshll.u32 %v1850, 16
          %v1880 = vrot.slane %v1878, 5
          %v1881 = vor.u32 %v1877, %v1880
          %v1882 = vrot.slane %v1881, 4
          %v1884 = vshll.u32 %v1851, 16
          %v1886 = vrot.slane %v1884, 5
          %v1887 = vsel %vm816, %v1882, %v1886
          %v1888 = vshrl.u32 %v1851, 16
          %v1890 = vrot.slane %v1888, 4
          %v1891 = vor.u32 %v1890, %v1886
          %v1892 = vrot.slane %v1891, 4
          %v1894 = vshll.u32 %v1852, 16
          %v1896 = vrot.slane %v1894, 5
          %v1897 = vsel %vm816, %v1892, %v1896
          %v1899 = vshrl.u32 %v1853, 16
          %v1901 = vrot.slane %v1899, 4
          %v1902 = vshll.u32 %v1853, 16
          %v1904 = vrot.slane %v1902, 5
          %v1905 = vor.u32 %v1901, %v1904
          %v1906 = vrot.slane %v1905, 4
          %v1908 = vshll.u32 %v1854, 16
          %v1910 = vrot.slane %v1908, 5
          %v1911 = vsel %vm816, %v1906, %v1910
          %v1912 = vshrl.u32 %v1854, 16
          %v1914 = vrot.slane %v1912, 4
          %v1915 = vor.u32 %v1914, %v1910
          %v1916 = vrot.slane %v1915, 4
          %v1918 = vshll.u32 %v1855, 16
          %v1920 = vrot.slane %v1918, 5
          %v1921 = vsel %vm816, %v1916, %v1920
          %v1923 = vshrl.u32 %v1856, 16
          %v1925 = vrot.slane %v1923, 4
          %v1926 = vshll.u32 %v1856, 16
          %v1928 = vrot.slane %v1926, 5
          %v1929 = vor.u32 %v1925, %v1928
          %v1930 = vrot.slane %v1929, 4
          %v1932 = vshll.u32 %v1857, 16
          %v1934 = vrot.slane %v1932, 5
          %v1935 = vsel %vm816, %v1930, %v1934
          %v1936 = vshrl.u32 %v1857, 16
          %v1938 = vrot.slane %v1936, 4
          %v1939 = vor.u32 %v1938, %v1934
          %v1940 = vrot.slane %v1939, 4
          %v1942 = vshll.u32 %v1858, 16
          %v1944 = vrot.slane %v1942, 5
          %v1945 = vsel %vm816, %v1940, %v1944
          %v1947 = vshrl.u32 %v1859, 16
          %v1949 = vrot.slane %v1947, 4
          %v1950 = vshll.u32 %v1859, 16
          %v1952 = vrot.slane %v1950, 5
          %v1953 = vor.u32 %v1949, %v1952
          %v1954 = vrot.slane %v1953, 4
          %v1956 = vshll.u32 %v1860, 16
          %v1958 = vrot.slane %v1956, 5
          %v1959 = vsel %vm816, %v1954, %v1958
          %v1960 = vshrl.u32 %v1860, 16
          %v1962 = vrot.slane %v1960, 4
          %v1963 = vor.u32 %v1962, %v1958
          %v1964 = vrot.slane %v1963, 4
          %v1966 = vshll.u32 %v1861, 16
          %v1968 = vrot.slane %v1966, 5
          %v1969 = vsel %vm816, %v1964, %v1968
          %v1971 = vshrl.u32 %v1862, 16
          %v1973 = vrot.slane %v1971, 4
          %v1974 = vshll.u32 %v1862, 16
          %v1976 = vrot.slane %v1974, 5
          %v1977 = vor.u32 %v1973, %v1976
          %v1978 = vrot.slane %v1977, 4
          %v1980 = vshll.u32 %v1863, 16
          %v1982 = vrot.slane %v1980, 5
          %v1983 = vsel %vm816, %v1978, %v1982
          %v1984 = vshrl.u32 %v1863, 16
          %v1986 = vrot.slane %v1984, 4
          %v1987 = vor.u32 %v1986, %v1982
          %v1988 = vrot.slane %v1987, 4
          %v1990 = vshll.u32 %v1864, 16
          %v1992 = vrot.slane %v1990, 5
          %v1993 = vsel %vm816, %v1988, %v1992
          %v1995 = vshrl.u32 %v1865, 16
          %v1997 = vrot.slane %v1995, 4
          %v1998 = vshll.u32 %v1865, 16
          %v2000 = vrot.slane %v1998, 5
          %v2001 = vor.u32 %v1997, %v2000
          %v2002 = vrot.slane %v2001, 4
          %v2004 = vshll.u32 %v1866, 16
          %v2006 = vrot.slane %v2004, 5
          %v2007 = vsel %vm816, %v2002, %v2006
          %v2008 = vshrl.u32 %v1866, 16
          %v2010 = vrot.slane %v2008, 4
          %v2011 = vor.u32 %v2010, %v2006
          %v2012 = vrot.slane %v2011, 4
          %v2014 = vshll.u32 %v1867, 16
          %v2016 = vrot.slane %v2014, 5
          %v2017 = vsel %vm816, %v2012, %v2016
          %v2019 = vshrl.u32 %v1868, 16
          %v2021 = vrot.slane %v2019, 4
          %v2022 = vshll.u32 %v1868, 16
          %v2024 = vrot.slane %v2022, 5
          %v2025 = vor.u32 %v2021, %v2024
          %v2026 = vrot.slane %v2025, 4
          %v2028 = vshll.u32 %v1869, 16
          %v2030 = vrot.slane %v2028, 5
          %v2031 = vsel %vm816, %v2026, %v2030
          %v2032 = vshrl.u32 %v1869, 16
          %v2034 = vrot.slane %v2032, 4
          %v2035 = vor.u32 %v2034, %v2030
          %v2036 = vrot.slane %v2035, 4
          %v2038 = vshll.u32 %v1870, 16
          %v2040 = vrot.slane %v2038, 5
          %v2041 = vsel %vm816, %v2036, %v2040
          %v2043 = vshrl.u32 %v1871, 16
          %v2045 = vrot.slane %v2043, 4
          %v2046 = vshll.u32 %v1871, 16
          %v2048 = vrot.slane %v2046, 5
          %v2049 = vor.u32 %v2045, %v2048
          %v2050 = vrot.slane %v2049, 4
          %v2052 = vshll.u32 %v1872, 16
          %v2054 = vrot.slane %v2052, 5
          %v2055 = vsel %vm816, %v2050, %v2054
          %v2056 = vshrl.u32 %v1872, 16
          %v2058 = vrot.slane %v2056, 4
          %v2059 = vor.u32 %v2058, %v2054
          %v2060 = vrot.slane %v2059, 4
          %v2062 = vshll.u32 %v1873, 16
          %v2064 = vrot.slane %v2062, 5
          %v2065 = vsel %vm816, %v2060, %v2064
          %v2066 = vunpack.c.l.b16 %v1887
          %v2067 = vunpack.c.l.b16 %v1897
          %v2068 = vunpack.c.l.b16 %v1911
          %v2069 = vunpack.c.l.b16 %v1921
          %v2070 = vunpack.c.l.b16 %v1935
          %v2071 = vunpack.c.l.b16 %v1945
          %v2072 = vunpack.c.l.b16 %v1959
          %v2073 = vunpack.c.l.b16 %v1969
          %v2074 = vunpack.c.l.b16 %v1983
          %v2075 = vunpack.c.l.b16 %v1993
          %v2076 = vunpack.c.l.b16 %v2007
          %v2077 = vunpack.c.l.b16 %v2017
          %v2078 = vunpack.c.l.b16 %v2031
          %v2079 = vunpack.c.l.b16 %v2041
          %v2080 = vunpack.c.l.b16 %v2055
          %v2081 = vunpack.c.l.b16 %v2065
          %v2082 = vpack.c.b16 %v2067, %v2066
          %v2083 = vpack.c.b16 %v2069, %v2068
          %v2084 = vpack.c.b16 %v2071, %v2070
          %v2085 = vpack.c.b16 %v2073, %v2072
          %v2086 = vpack.c.b16 %v2075, %v2074
          %v2087 = vpack.c.b16 %v2077, %v2076
          %v2088 = vpack.c.b16 %v2079, %v2078
          %v2089 = vpack.c.b16 %v2081, %v2080
          %2090 = vrot.lane.b32.xlu0 %v2082, 28
          %v2091 = vpop.permute.xlu0 %2090
          %2092 = vrot.lane.b32.xlu0 %v2083, 28
          %v2093 = vpop.permute.xlu0 %2092
          %2094 = vrot.lane.b32.xlu0 %v2084, 28
          %v2095 = vpop.permute.xlu0 %2094
          %2096 = vrot.lane.b32.xlu0 %v2085, 28
          %v2097 = vpop.permute.xlu0 %2096
          %2098 = vrot.lane.b32.xlu0 %v2086, 28
          %v2099 = vpop.permute.xlu0 %2098
          %2100 = vrot.lane.b32.xlu0 %v2087, 28
          %v2101 = vpop.permute.xlu0 %2100
          %2102 = vrot.lane.b32.xlu0 %v2088, 28
          %v2103 = vpop.permute.xlu0 %2102
          %2104 = vrot.lane.b32.xlu0 %v2089, 28
          %v2105 = vpop.permute.xlu0 %2104
          %vm2114 = vcmask 261344
          %2115 = vst.msk [vmem:[#allocation3] sm:$0xff] %vm2114, %v2091
          %2116 = vst.msk [vmem:[#allocation3 + $0x8] sm:$0xff] %vm2114, %v2093
          %2117 = vst.msk [vmem:[#allocation3 + $0x10] sm:$0xff] %vm2114, %v2095
          %2118 = vst.msk [vmem:[#allocation3 + $0x18] sm:$0xff] %vm2114, %v2097
          %2119 = vst.msk [vmem:[#allocation3 + $0x20] sm:$0xff] %vm2114, %v2099
          %2120 = vst.msk [vmem:[#allocation3 + $0x28] sm:$0xff] %vm2114, %v2101
          %2121 = vst.msk [vmem:[#allocation3 + $0x30] sm:$0xff] %vm2114, %v2103
          %2122 = vst.msk [vmem:[#allocation3 + $0x38] sm:$0xff] %vm2114, %v2105
          %v2123 = vld [vmem:[%s1760] sm:$0xe]
          %v2124 = vld [vmem:[%s1760 + $0x4] sm:$0xf]
          %v2125 = vld [vmem:[%s1760 + $0x8] sm:$0x1]
          %v2126 = vld [vmem:[%s1760 + $0xc] sm:$0xe]
          %v2127 = vld [vmem:[%s1760 + $0x10] sm:$0xf]
          %v2128 = vld [vmem:[%s1760 + $0x14] sm:$0x1]
          %v2129 = vld [vmem:[%s1760 + $0x18] sm:$0xe]
          %v2130 = vld [vmem:[%s1760 + $0x1c] sm:$0xf]
          %v2131 = vld [vmem:[%s1760 + $0x20] sm:$0x1]
          %v2132 = vld [vmem:[%s1760 + $0x24] sm:$0xe]
          %v2133 = vld [vmem:[%s1760 + $0x28] sm:$0xf]
          %v2134 = vld [vmem:[%s1760 + $0x2c] sm:$0x1]
          %v2135 = vld [vmem:[%s1760 + $0x30] sm:$0xe]
          %v2136 = vld [vmem:[%s1760 + $0x34] sm:$0xf]
          %v2137 = vld [vmem:[%s1760 + $0x38] sm:$0x1]
          %v2138 = vld [vmem:[%s1760 + $0x3c] sm:$0xe]
          %v2139 = vld [vmem:[%s1760 + $0x40] sm:$0xf]
          %v2140 = vld [vmem:[%s1760 + $0x44] sm:$0x1]
          %v2141 = vld [vmem:[%s1760 + $0x48] sm:$0xe]
          %v2142 = vld [vmem:[%s1760 + $0x4c] sm:$0xf]
          %v2143 = vld [vmem:[%s1760 + $0x50] sm:$0x1]
          %v2144 = vld [vmem:[%s1760 + $0x54] sm:$0xe]
          %v2145 = vld [vmem:[%s1760 + $0x58] sm:$0xf]
          %v2146 = vld [vmem:[%s1760 + $0x5c] sm:$0x1]
          %v2171 = vrot.slane %v2123, 5
          %v2172 = vrot.slane %v2171, 4
          %v2173 = vrot.slane %v2124, 5
          %v2174 = vsel %vm1116, %v2172, %v2173
          %v2175 = vrot.slane %v2173, 4
          %v2176 = vrot.slane %v2125, 5
          %v2177 = vsel %vm1116, %v2175, %v2176
          %v2178 = vrot.slane %v2126, 5
          %v2179 = vrot.slane %v2178, 4
          %v2180 = vrot.slane %v2127, 5
          %v2181 = vsel %vm1116, %v2179, %v2180
          %v2182 = vrot.slane %v2180, 4
          %v2183 = vrot.slane %v2128, 5
          %v2184 = vsel %vm1116, %v2182, %v2183
          %v2185 = vrot.slane %v2129, 5
          %v2186 = vrot.slane %v2185, 4
          %v2187 = vrot.slane %v2130, 5
          %v2188 = vsel %vm1116, %v2186, %v2187
          %v2189 = vrot.slane %v2187, 4
          %v2190 = vrot.slane %v2131, 5
          %v2191 = vsel %vm1116, %v2189, %v2190
          %v2192 = vrot.slane %v2132, 5
          %v2193 = vrot.slane %v2192, 4
          %v2194 = vrot.slane %v2133, 5
          %v2195 = vsel %vm1116, %v2193, %v2194
          %v2196 = vrot.slane %v2194, 4
          %v2197 = vrot.slane %v2134, 5
          %v2198 = vsel %vm1116, %v2196, %v2197
          %v2199 = vrot.slane %v2135, 5
          %v2200 = vrot.slane %v2199, 4
          %v2201 = vrot.slane %v2136, 5
          %v2202 = vsel %vm1116, %v2200, %v2201
          %v2203 = vrot.slane %v2201, 4
          %v2204 = vrot.slane %v2137, 5
          %v2205 = vsel %vm1116, %v2203, %v2204
          %v2206 = vrot.slane %v2138, 5
          %v2207 = vrot.slane %v2206, 4
          %v2208 = vrot.slane %v2139, 5
          %v2209 = vsel %vm1116, %v2207, %v2208
          %v2210 = vrot.slane %v2208, 4
          %v2211 = vrot.slane %v2140, 5
          %v2212 = vsel %vm1116, %v2210, %v2211
          %v2213 = vrot.slane %v2141, 5
          %v2214 = vrot.slane %v2213, 4
          %v2215 = vrot.slane %v2142, 5
          %v2216 = vsel %vm1116, %v2214, %v2215
          %v2217 = vrot.slane %v2215, 4
          %v2218 = vrot.slane %v2143, 5
          %v2219 = vsel %vm1116, %v2217, %v2218
          %v2220 = vrot.slane %v2144, 5
          %v2221 = vrot.slane %v2220, 4
          %v2222 = vrot.slane %v2145, 5
          %v2223 = vsel %vm1116, %v2221, %v2222
          %v2224 = vrot.slane %v2222, 4
          %v2225 = vrot.slane %v2146, 5
          %v2226 = vsel %vm1116, %v2224, %v2225
          %v2227 = vunpack.c.l.b16 %v2174
          %v2228 = vunpack.c.l.b16 %v2177
          %v2229 = vunpack.c.l.b16 %v2181
          %v2230 = vunpack.c.l.b16 %v2184
          %v2231 = vunpack.c.l.b16 %v2188
          %v2232 = vunpack.c.l.b16 %v2191
          %v2233 = vunpack.c.l.b16 %v2195
          %v2234 = vunpack.c.l.b16 %v2198
          %v2235 = vunpack.c.l.b16 %v2202
          %v2236 = vunpack.c.l.b16 %v2205
          %v2237 = vunpack.c.l.b16 %v2209
          %v2238 = vunpack.c.l.b16 %v2212
          %v2239 = vunpack.c.l.b16 %v2216
          %v2240 = vunpack.c.l.b16 %v2219
          %v2241 = vunpack.c.l.b16 %v2223
          %v2242 = vunpack.c.l.b16 %v2226
          %v2243 = vpack.c.b16 %v2228, %v2227
          %v2244 = vpack.c.b16 %v2230, %v2229
          %v2245 = vpack.c.b16 %v2232, %v2231
          %v2246 = vpack.c.b16 %v2234, %v2233
          %v2247 = vpack.c.b16 %v2236, %v2235
          %v2248 = vpack.c.b16 %v2238, %v2237
          %v2249 = vpack.c.b16 %v2240, %v2239
          %v2250 = vpack.c.b16 %v2242, %v2241
          %2251 = vrot.lane.b32.xlu0 %v2243, 32
          %v2252 = vpop.permute.xlu0 %2251
          %2253 = vrot.lane.b32.xlu0 %v2244, 32
          %v2254 = vpop.permute.xlu0 %2253
          %2255 = vrot.lane.b32.xlu0 %v2245, 32
          %v2256 = vpop.permute.xlu0 %2255
          %2257 = vrot.lane.b32.xlu0 %v2246, 32
          %v2258 = vpop.permute.xlu0 %2257
          %2259 = vrot.lane.b32.xlu0 %v2247, 32
          %v2260 = vpop.permute.xlu0 %2259
          %2261 = vrot.lane.b32.xlu0 %v2248, 32
          %v2262 = vpop.permute.xlu0 %2261
          %2263 = vrot.lane.b32.xlu0 %v2249, 32
          %v2264 = vpop.permute.xlu0 %2263
          %2265 = vrot.lane.b32.xlu0 %v2250, 32
          %v2266 = vpop.permute.xlu0 %2265
          %vm2275 = vcmask 294144
          %2276 = vst.msk [vmem:[#allocation3] sm:$0xff] %vm2275, %v2252
          %2277 = vst.msk [vmem:[#allocation3 + $0x8] sm:$0xff] %vm2275, %v2254
          %2278 = vst.msk [vmem:[#allocation3 + $0x10] sm:$0xff] %vm2275, %v2256
          %2279 = vst.msk [vmem:[#allocation3 + $0x18] sm:$0xff] %vm2275, %v2258
          %2280 = vst.msk [vmem:[#allocation3 + $0x20] sm:$0xff] %vm2275, %v2260
          %2281 = vst.msk [vmem:[#allocation3 + $0x28] sm:$0xff] %vm2275, %v2262
          %2282 = vst.msk [vmem:[#allocation3 + $0x30] sm:$0xff] %vm2275, %v2264
          %2283 = vst.msk [vmem:[#allocation3 + $0x38] sm:$0xff] %vm2275, %v2266
        $region32: #{basic_conv_forward.1} parent=27 // pred_fallthru
          _
        %v2284 = vld [vmem:[#allocation3] sm:$0xff]
        %v2285 = vld [vmem:[#allocation3 + $0x8] sm:$0xff]
        %v2286 = vld [vmem:[#allocation3 + $0x10] sm:$0xff]
        %v2287 = vld [vmem:[#allocation3 + $0x18] sm:$0xff]
        %v2288 = vld [vmem:[#allocation3 + $0x20] sm:$0xff]
        %v2289 = vld [vmem:[#allocation3 + $0x28] sm:$0xff]
        %v2290 = vld [vmem:[#allocation3 + $0x30] sm:$0xff]
        %v2291 = vld [vmem:[#allocation3 + $0x38] sm:$0xff]
        %v2292 = vld [vmem:[%s177] sm:$0xf]
        %v2293 = vld [vmem:[%s177 + $0x4] sm:$0xf]
        %v2294 = vld [vmem:[%s177 + $0x8] sm:$0xf]
        %v2295 = vld [vmem:[%s177 + $0xc] sm:$0xf]
        %v2296 = vld [vmem:[%s177 + $0x10] sm:$0x3]
        %v2302 = vunpack.c.l.b16 %v2292
        %v2303 = vunpack.c.l.b16 %v2293
        %v2304 = vunpack.c.l.b16 %v2294
        %v2305 = vunpack.c.l.b16 %v2295
        %v2306 = vunpack.c.l.b16 %v2296
        %v2307 = vpack.c.b16 %v2303, %v2302
        %v2308 = vpack.c.b16 %v2305, %v2304
        %v2309 = vpack.c.b16 %v2306, %v2306
        %vm2312 = vcmask 293888
        %v2314 = vsel %vm2312, %v2284, 0
        %v2317 = vsel %vm2312, %v2285, 0
        %v2320 = vsel %vm2312, %v2286, 0
        %v2323 = vsel %vm2312, %v2287, 0
        %v2326 = vsel %vm2312, %v2288, 0
        %v2329 = vsel %vm2312, %v2289, 0
        %v2332 = vsel %vm2312, %v2290, 0
        %v2335 = vsel %vm2312, %v2291, 0
        %vm2337 = vcmask 1041408
        %v2339 = vsel %vm2337, %v2309, 0
        %2341 = vmatprep.subr.bf16.mxu0 0
        %2342 = vmatpush1.bf16.msra.mxu0 %v2307
        %2343 = vmatprep.subr.bf16.mxu0 0
        %2344 = vmatpush1.bf16.msra.mxu0 %v2308
        %2345 = vmatprep.subr.bf16.mxu0 0
        %2346 = vmatpush1.bf16.msra.mxu0 %v2339
        %2347 = vmatprep.subr.bf16.mxu0 0
        %2348 = vmatpush1.bf16.msra.mxu0 0
        %2349 = vmatprep.subr.bf16.mxu0 0
        %2350 = vmatpush1.bf16.msra.mxu0 0
        %2351 = vmatprep.subr.bf16.mxu0 0
        %2352 = vmatpush1.bf16.msra.mxu0 0
        %2353 = vmatprep.subr.bf16.mxu0 0
        %2354 = vmatpush1.bf16.msra.mxu0 0
        %2355 = vmatprep.subr.bf16.mxu0 0
        %2356 = vmatpush1.bf16.msra.mxu0 0
        %2357 = vmatprep.subr.bf16.mxu0 0
        %2358 = vmatpush1.bf16.msra.mxu0 0
        %2359 = vmatprep.subr.bf16.mxu0 0
        %2360 = vmatpush1.bf16.msra.mxu0 0
        %2361 = vmatprep.subr.bf16.mxu0 0
        %2362 = vmatpush1.bf16.msra.mxu0 0
        %2363 = vmatprep.subr.bf16.mxu0 0
        %2364 = vmatpush1.bf16.msra.mxu0 0
        %2365 = vmatprep.subr.bf16.mxu0 0
        %2366 = vmatpush1.bf16.msra.mxu0 0
        %2367 = vmatprep.subr.bf16.mxu0 0
        %2368 = vmatpush1.bf16.msra.mxu0 0
        %2369 = vmatprep.subr.bf16.mxu0 0
        %2370 = vmatpush1.bf16.msra.mxu0 0
        %2371 = vmatprep.subr.bf16.mxu0 0
        %2372 = vmatpush1.bf16.msra.mxu0 0
        %2373 = vmatprep.mubr.bf16.mxu0 0
        %2374 = vmatmul.mubr.bf16.gmra.mrb[0].mxu0 %v2314
        %v2375 = vpop.f32.mrb[0].mxu0
        %v2376 = vadd.f32 0.0, %v2375
        %v2377 = vpop.f32.mrb[0].mxu0
        %v2378 = vpop.f32.mrb[0].mxu0
        %v2379 = vadd.f32 0.0, %v2378
        %v2380 = vpop.f32.mrb[0].mxu0
        %2381 = vmatprep.mubr.bf16.mxu0 0
        %2382 = vmatmul.mubr.bf16.gmra.mrb[0].mxu0 %v2317
        %v2383 = vpop.f32.mrb[0].mxu0
        %v2384 = vadd.f32 0.0, %v2383
        %v2385 = vpop.f32.mrb[0].mxu0
        %v2386 = vpop.f32.mrb[0].mxu0
        %v2387 = vadd.f32 0.0, %v2386
        %v2388 = vpop.f32.mrb[0].mxu0
        %2389 = vmatprep.mubr.bf16.mxu0 0
        %2390 = vmatmul.mubr.bf16.gmra.mrb[0].mxu0 %v2320
        %v2391 = vpop.f32.mrb[0].mxu0
        %v2392 = vadd.f32 0.0, %v2391
        %v2393 = vpop.f32.mrb[0].mxu0
        %v2394 = vpop.f32.mrb[0].mxu0
        %v2395 = vadd.f32 0.0, %v2394
        %v2396 = vpop.f32.mrb[0].mxu0
        %2397 = vmatprep.mubr.bf16.mxu0 0
        %2398 = vmatmul.mubr.bf16.gmra.mrb[0].mxu0 %v2323
        %v2399 = vpop.f32.mrb[0].mxu0
        %v2400 = vadd.f32 0.0, %v2399
        %v2401 = vpop.f32.mrb[0].mxu0
        %v2402 = vpop.f32.mrb[0].mxu0
        %v2403 = vadd.f32 0.0, %v2402
        %v2404 = vpop.f32.mrb[0].mxu0
        %2405 = vmatprep.mubr.bf16.mxu0 0
        %2406 = vmatmul.mubr.bf16.gmra.mrb[0].mxu0 %v2326
        %v2407 = vpop.f32.mrb[0].mxu0
        %v2408 = vadd.f32 0.0, %v2407
        %v2409 = vpop.f32.mrb[0].mxu0
        %v2410 = vpop.f32.mrb[0].mxu0
        %v2411 = vadd.f32 0.0, %v2410
        %v2412 = vpop.f32.mrb[0].mxu0
        %2413 = vmatprep.mubr.bf16.mxu0 0
        %2414 = vmatmul.mubr.bf16.gmra.mrb[0].mxu0 %v2329
        %v2415 = vpop.f32.mrb[0].mxu0
        %v2416 = vadd.f32 0.0, %v2415
        %v2417 = vpop.f32.mrb[0].mxu0
        %v2418 = vpop.f32.mrb[0].mxu0
        %v2419 = vadd.f32 0.0, %v2418
        %v2420 = vpop.f32.mrb[0].mxu0
        %2421 = vmatprep.mubr.bf16.mxu0 0
        %2422 = vmatmul.mubr.bf16.gmra.mrb[0].mxu0 %v2332
        %v2423 = vpop.f32.mrb[0].mxu0
        %v2424 = vadd.f32 0.0, %v2423
        %v2425 = vpop.f32.mrb[0].mxu0
        %v2426 = vpop.f32.mrb[0].mxu0
        %v2427 = vadd.f32 0.0, %v2426
        %v2428 = vpop.f32.mrb[0].mxu0
        %2429 = vmatprep.mubr.bf16.mxu0 0
        %2430 = vmatmul.mubr.bf16.gmra.mrb[0].mxu0 %v2335
        %v2431 = vpop.f32.mrb[0].mxu0
        %v2432 = vadd.f32 0.0, %v2431
        %v2433 = vpop.f32.mrb[0].mxu0
        %v2434 = vpop.f32.mrb[0].mxu0
        %v2435 = vadd.f32 0.0, %v2434
        %v2436 = vpop.f32.mrb[0].mxu0
        %2437 = vdwg.mxu0
        %v2438 = vmax.f32 %v2376, 0.0
        %v2439 = vmax.f32 %v2379, 0.0
        %v2440 = vmax.f32 %v2384, 0.0
        %v2441 = vmax.f32 %v2387, 0.0
        %v2442 = vmax.f32 %v2392, 0.0
        %v2443 = vmax.f32 %v2395, 0.0
        %v2444 = vmax.f32 %v2400, 0.0
        %v2445 = vmax.f32 %v2403, 0.0
        %v2446 = vmax.f32 %v2408, 0.0
        %v2447 = vmax.f32 %v2411, 0.0
        %v2448 = vmax.f32 %v2416, 0.0
        %v2449 = vmax.f32 %v2419, 0.0
        %v2450 = vmax.f32 %v2424, 0.0
        %v2451 = vmax.f32 %v2427, 0.0
        %v2452 = vmax.f32 %v2432, 0.0
        %v2453 = vmax.f32 %v2435, 0.0
        %2454 = vxpose.xlu0.b32.start [1/16] %v2438, 128
        %2455 = vxpose.xlu0.b32.cont [2/16] %v2439, 128
        %2456 = vxpose.xlu0.b32.cont [3/16] %v2440, 128
        %2457 = vxpose.xlu0.b32.cont [4/16] %v2441, 128
        %2458 = vxpose.xlu0.b32.cont [5/16] %v2442, 128
        %2459 = vxpose.xlu0.b32.cont [6/16] %v2443, 128
        %2460 = vxpose.xlu0.b32.cont [7/16] %v2444, 128
        %2461 = vxpose.xlu0.b32.cont [8/16] %v2445, 128
        %2462 = vxpose.xlu0.b32.cont [9/16] %v2446, 128
        %2463 = vxpose.xlu0.b32.cont [10/16] %v2447, 128
        %2464 = vxpose.xlu0.b32.cont [11/16] %v2448, 128
        %2465 = vxpose.xlu0.b32.cont [12/16] %v2449, 128
        %2466 = vxpose.xlu0.b32.cont [13/16] %v2450, 128
        %2467 = vxpose.xlu0.b32.cont [14/16] %v2451, 128
        %2468 = vxpose.xlu0.b32.cont [15/16] %v2452, 128
        %2469 = vxpose.xlu0.b32.end [16/16] %v2453, 128
        %v2470 = vpop.trf.xlu0
        %v2471 = vpop.trf.xlu0
        %v2472 = vpop.trf.xlu0
        %v2473 = vpop.trf.xlu0
        %v2474 = vpop.trf.xlu0
        %v2475 = vpop.trf.xlu0
        %v2476 = vpop.trf.xlu0
        %v2477 = vpop.trf.xlu0
        %v2478 = vpop.trf.xlu0
        %v2479 = vpop.trf.xlu0
        %v2480 = vpop.trf.xlu0
        %v2481 = vpop.trf.xlu0
        %v2482 = vpop.trf.xlu0
        %v2483 = vpop.trf.xlu0
        %v2484 = vpop.trf.xlu0
        %v2485 = vpop.trf.xlu0
        %2486 = vst [vmem:[%s168] sm:$0xff] %v2470
        %2487 = vst [vmem:[%s168 + $0x8] sm:$0xff] %v2471
        %2488 = vst [vmem:[%s168 + $0x10] sm:$0xff] %v2472
        %2489 = vst [vmem:[%s168 + $0x18] sm:$0xff] %v2473
        %2490 = vst [vmem:[%s168 + $0x20] sm:$0xff] %v2474
        %2491 = vst [vmem:[%s168 + $0x28] sm:$0xff] %v2475
        %2492 = vst [vmem:[%s168 + $0x30] sm:$0xff] %v2476
        %2493 = vst [vmem:[%s168 + $0x38] sm:$0xff] %v2477
        %2494 = vst [vmem:[%s168 + $0x40] sm:$0xff] %v2478
        %2495 = vst [vmem:[%s168 + $0x48] sm:$0xff] %v2479
        %2496 = vst [vmem:[%s168 + $0x50] sm:$0xff] %v2480
        %2497 = vst [vmem:[%s168 + $0x58] sm:$0xff] %v2481
        %2498 = vst [vmem:[%s168 + $0x60] sm:$0xff] %v2482
        %2499 = vst [vmem:[%s168 + $0x68] sm:$0xff] %v2483
        %2500 = vst [vmem:[%s168 + $0x70] sm:$0xff] %v2484
        %2501 = vst [vmem:[%s168 + $0x78] sm:$0xff] %v2485
        %s2502 = sand.u32 %s96, 1
        %s2503 = sand.u32 %s96, 1
        %s2504 = smul.addr %s2503, 128
        %s2505 = scalar_lea.vmem [#allocation4], %s2504
        // Predicated region
        $region33: #{basic_conv_forward.1} parent=27 // pred_check
          %p2506 = pneg %p106
        $region34: #{basic_conv_forward.1} parent=27 // pred_check_branch
          %2508 = sbr.rel (%p2506) target = $region36
        $region35: #{basic_conv_forward.1} parent=27 // pred_region
          %s2509 = smul.u32 16, %s20
          %s2510 = smul.addr %s2509, 2
          %s2511 = sadd.s32 %s19, %s2510
          %s2512 = smul.addr %s18, 32
          %s2513 = sadd.s32 %s2511, %s2512
          %s2514 = smul.addr %s2513, 8
          %s2515 = scalar_lea.vmem %s2, %s2514
          // Predicated region
          $region37: #{basic_conv_forward.1} parent=35 // pred_check
            _
          $region38: #{basic_conv_forward.1} parent=35 // pred_check_branch
            %2517 = sbr.rel (0) target = $region40
          $region39: #{basic_conv_forward.1} parent=35 // pred_region
            // Predicated region
            $region41: #{basic_conv_forward.1} parent=39 // pred_check
              _
            $region42: #{basic_conv_forward.1} parent=39 // pred_check_branch
              %2519 = sbr.rel (0) target = $region44
            $region43: #{basic_conv_forward.1} parent=39 // pred_region
              // Predicated region
              $region56: #{basic_conv_forward.1} parent=43 // pred_check
                _
              $region57: #{basic_conv_forward.1} parent=43 // pred_check_branch
                %2564 = sbr.rel (0) target = $region59
              $region58: #{basic_conv_forward.1} parent=43 // pred_region
                loop: start=0, step=1, limit=1
                $region60: #{basic_conv_forward.1} parent=58 // loop_pre_header
                  _
                $region61: #{basic_conv_forward.1} parent=58 // loop_header
                  %s2566 = sphi 0, %s2570
                  %p2567 = scmp.ge.s32.totalorder %s2566, 1
                  %s2571 = sphi %s2505, %s2505
                  %s2572 = sphi %s2515, %s2515
                $region62: #{basic_conv_forward.1} parent=58 // loop_header_branch
                  %2569 = sbr.rel (%p2567) target = $region66
                $region63: #{basic_conv_forward.1} parent=58 // loop_body
                  %v2573 = vld [vmem:[%s2571] sm:$0xff]
                  %2574 = vst [vmem:[%s2572] sm:$0xff] %v2573
                  %v2575 = vld [vmem:[%s2571 + $0x8] sm:$0xff]
                  %2576 = vst [vmem:[%s2572 + $0x10] sm:$0xff] %v2575
                  %v2577 = vld [vmem:[%s2571 + $0x10] sm:$0xff]
                  %2578 = vst [vmem:[%s2572 + $0x20] sm:$0xff] %v2577
                  %v2579 = vld [vmem:[%s2571 + $0x18] sm:$0xff]
                  %2580 = vst [vmem:[%s2572 + $0x30] sm:$0xff] %v2579
                  %v2581 = vld [vmem:[%s2571 + $0x20] sm:$0xff]
                  %2582 = vst [vmem:[%s2572 + $0x40] sm:$0xff] %v2581
                  %v2583 = vld [vmem:[%s2571 + $0x28] sm:$0xff]
                  %2584 = vst [vmem:[%s2572 + $0x50] sm:$0xff] %v2583
                  %v2585 = vld [vmem:[%s2571 + $0x30] sm:$0xff]
                  %2586 = vst [vmem:[%s2572 + $0x60] sm:$0xff] %v2585
                  %v2587 = vld [vmem:[%s2571 + $0x38] sm:$0xff]
                  %2588 = vst [vmem:[%s2572 + $0x70] sm:$0xff] %v2587
                  %v2589 = vld [vmem:[%s2571 + $0x40] sm:$0xff]
                  %2590 = vst [vmem:[%s2572 + $0x80] sm:$0xff] %v2589
                  %v2591 = vld [vmem:[%s2571 + $0x48] sm:$0xff]
                  %2592 = vst [vmem:[%s2572 + $0x90] sm:$0xff] %v2591
                  %v2593 = vld [vmem:[%s2571 + $0x50] sm:$0xff]
                  %2594 = vst [vmem:[%s2572 + $0xa0] sm:$0xff] %v2593
                  %v2595 = vld [vmem:[%s2571 + $0x58] sm:$0xff]
                  %2596 = vst [vmem:[%s2572 + $0xb0] sm:$0xff] %v2595
                  %v2597 = vld [vmem:[%s2571 + $0x60] sm:$0xff]
                  %2598 = vst [vmem:[%s2572 + $0xc0] sm:$0xff] %v2597
                  %v2599 = vld [vmem:[%s2571 + $0x68] sm:$0xff]
                  %2600 = vst [vmem:[%s2572 + $0xd0] sm:$0xff] %v2599
                  %v2601 = vld [vmem:[%s2571 + $0x70] sm:$0xff]
                  %2602 = vst [vmem:[%s2572 + $0xe0] sm:$0xff] %v2601
                  %v2603 = vld [vmem:[%s2571 + $0x78] sm:$0xff]
                  %2604 = vst [vmem:[%s2572 + $0xf0] sm:$0xff] %v2603
                $region64: #{basic_conv_forward.1} parent=58 // loop_footer
                  %s2570 = sadd.s32 1, %s2566
                $region65: #{basic_conv_forward.1} parent=58 // loop_footer_branch
                  %2565 = sbr.rel target = $region61
                $region66: #{basic_conv_forward.1} parent=58 // loop_exit
                  _
              $region59: #{basic_conv_forward.1} parent=43 // pred_fallthru
                _
              // Predicated region
              $region67: #{basic_conv_forward.1} parent=43 // pred_check
                _
              $region68: #{basic_conv_forward.1} parent=43 // pred_check_branch
                %2606 = sbr.rel target = $region70
              $region69: #{basic_conv_forward.1} parent=43 // pred_region
                _
              $region70: #{basic_conv_forward.1} parent=43 // pred_fallthru
                _
            $region44: #{basic_conv_forward.1} parent=39 // pred_fallthru
              _
            // Predicated region
            $region45: #{basic_conv_forward.1} parent=39 // pred_check
              _
            $region46: #{basic_conv_forward.1} parent=39 // pred_check_branch
              %2521 = sbr.rel target = $region48
            $region47: #{basic_conv_forward.1} parent=39 // pred_region
              loop: start=0, step=1, limit=1
              $region49: #{basic_conv_forward.1} parent=47 // loop_pre_header
                _
              $region50: #{basic_conv_forward.1} parent=47 // loop_header
                %s2524 = sphi 0, %s2528
                %p2525 = scmp.ge.s32.totalorder %s2524, 1
                %s2529 = sphi %s2505, %s2505
                %s2530 = sphi %s2515, %s2515
              $region51: #{basic_conv_forward.1} parent=47 // loop_header_branch
                %2527 = sbr.rel (%p2525) target = $region55
              $region52: #{basic_conv_forward.1} parent=47 // loop_body
                %v2531 = vld [vmem:[%s2529] sm:$0xff]
                %2532 = vst [vmem:[%s2530] sm:$0xff] %v2531
                %v2533 = vld [vmem:[%s2529 + $0x8] sm:$0xff]
                %2534 = vst [vmem:[%s2530 + $0x10] sm:$0xff] %v2533
                %v2535 = vld [vmem:[%s2529 + $0x10] sm:$0xff]
                %2536 = vst [vmem:[%s2530 + $0x20] sm:$0xff] %v2535
                %v2537 = vld [vmem:[%s2529 + $0x18] sm:$0xff]
                %2538 = vst [vmem:[%s2530 + $0x30] sm:$0xff] %v2537
                %v2539 = vld [vmem:[%s2529 + $0x20] sm:$0xff]
                %2540 = vst [vmem:[%s2530 + $0x40] sm:$0xff] %v2539
                %v2541 = vld [vmem:[%s2529 + $0x28] sm:$0xff]
                %2542 = vst [vmem:[%s2530 + $0x50] sm:$0xff] %v2541
                %v2543 = vld [vmem:[%s2529 + $0x30] sm:$0xff]
                %2544 = vst [vmem:[%s2530 + $0x60] sm:$0xff] %v2543
                %v2545 = vld [vmem:[%s2529 + $0x38] sm:$0xff]
                %2546 = vst [vmem:[%s2530 + $0x70] sm:$0xff] %v2545
                %v2547 = vld [vmem:[%s2529 + $0x40] sm:$0xff]
                %2548 = vst [vmem:[%s2530 + $0x80] sm:$0xff] %v2547
                %v2549 = vld [vmem:[%s2529 + $0x48] sm:$0xff]
                %2550 = vst [vmem:[%s2530 + $0x90] sm:$0xff] %v2549
                %v2551 = vld [vmem:[%s2529 + $0x50] sm:$0xff]
                %2552 = vst [vmem:[%s2530 + $0xa0] sm:$0xff] %v2551
                %v2553 = vld [vmem:[%s2529 + $0x58] sm:$0xff]
                %2554 = vst [vmem:[%s2530 + $0xb0] sm:$0xff] %v2553
                %v2555 = vld [vmem:[%s2529 + $0x60] sm:$0xff]
                %2556 = vst [vmem:[%s2530 + $0xc0] sm:$0xff] %v2555
                %v2557 = vld [vmem:[%s2529 + $0x68] sm:$0xff]
                %2558 = vst [vmem:[%s2530 + $0xd0] sm:$0xff] %v2557
                %v2559 = vld [vmem:[%s2529 + $0x70] sm:$0xff]
                %2560 = vst [vmem:[%s2530 + $0xe0] sm:$0xff] %v2559
                %v2561 = vld [vmem:[%s2529 + $0x78] sm:$0xff]
                %2562 = vst [vmem:[%s2530 + $0xf0] sm:$0xff] %v2561
              $region53: #{basic_conv_forward.1} parent=47 // loop_footer
                %s2528 = sadd.s32 1, %s2524
              $region54: #{basic_conv_forward.1} parent=47 // loop_footer_branch
                %2523 = sbr.rel target = $region50
              $region55: #{basic_conv_forward.1} parent=47 // loop_exit
                _
            $region48: #{basic_conv_forward.1} parent=39 // pred_fallthru
              _
          $region40: #{basic_conv_forward.1} parent=35 // pred_fallthru
            _
          %2607 = vnop
        $region36: #{basic_conv_forward.1} parent=27 // pred_fallthru
          _
      $region28: #{basic_conv_forward.1} parent=5 // pred_fallthru
        _
      %p2608 = scmp.le.s32.totalorder 2, %s8
      // Predicated region
      $region71: #{basic_conv_forward.1} parent=5 // pred_check
        %p2609 = pneg %p2608
      $region72: #{basic_conv_forward.1} parent=5 // pred_check_branch
        %2611 = sbr.rel (%p2609) target = $region74
      $region73: #{basic_conv_forward.1} parent=5 // pred_region
        %s2612 = ssub.s32 %s8, 2
        // Predicated region
        $region75: #{basic_conv_forward.1} parent=73 // pred_check
          %p2613 = pneg %p112
        $region76: #{basic_conv_forward.1} parent=73 // pred_check_branch
          %2615 = sbr.rel (%p2613) target = $region78
        $region77: #{basic_conv_forward.1} parent=73 // pred_region
          %s2616 = sand.u32 %s97, 1
          %s2617 = sand.u32 %s97, 1
          %s2618 = smul.addr %s2617, 128
          %s2619 = scalar_lea.vmem [#allocation4], %s2618
        $region78: #{basic_conv_forward.1} parent=73 // pred_fallthru
          _
      $region74: #{basic_conv_forward.1} parent=5 // pred_fallthru
        _
    $region6: #{basic_conv_forward.1} parent=1 // loop_footer
      %s12 = sadd.s32 1, %s8
    $region7: #{basic_conv_forward.1} parent=1 // loop_footer_branch
      %7 = sbr.rel target = $region3
    $region8: #{basic_conv_forward.1} parent=1 // loop_exit
      _

</llo_original>
